<compile_context>
chip_gen: v5e
topology: v5e:2x2
jax: 0.10.0
libtpu: 0.0.40
codegen_flags: <defaults>
</compile_context>

<pallas_src>
import functools

import jax
import jax.numpy as jnp
from jax.experimental import pallas as pl
from jax.experimental.pallas import tpu as pltpu


def _bottleneck_kernel(x_ref, w1_ref, w2_ref, fc1_ref, fc2_ref, w3_ref, sc_ref,
                       o_ref, *, H, W, GW, INTER, COUT):
    HW = H * W
    xs = x_ref[0]                                                 # (HW, Cin) bf16

    # ---- conv1 (1x1, bn1 scale pre-folded into weights) + bias + relu -------
    o1 = jnp.dot(xs, w1_ref[...], preferred_element_type=jnp.float32)
    o1 = jnp.maximum(o1 + sc_ref[0:1, 0:GW], 0.0)                 # (HW, GW) f32

    # ---- 3x3 conv (pad=1, stride=1) of SplAtConv2d (radix=1) ----------------
    # dx-im2col: lane-concatenate three column-shifted copies of o1 (boundary
    # columns zeroed at build time; the +/-1 column shift is realised by the
    # +/-1 row placement inside the zero-framed slab), then ONE wide matmul
    # with K = N = 3*GW.  dy is handled afterwards by accumulating three
    # row-shifted column-slices of the f32 result.
    col = jax.lax.broadcasted_iota(jnp.int32, (HW, 1), 0) % W
    o1b = o1.astype(jnp.bfloat16)
    o1_m = jnp.where(col == W - 1, 0.0, o1).astype(jnp.bfloat16)  # dx = -1 taps
    o1_p = jnp.where(col == 0, 0.0, o1).astype(jnp.bfloat16)      # dx = +1 taps

    def zrows(r):
        return jnp.zeros((r, GW), jnp.bfloat16)

    c_m = jnp.concatenate([zrows(W + 1), o1_m, zrows(W - 1)], axis=0)
    c_0 = jnp.concatenate([zrows(W),     o1b,  zrows(W)],     axis=0)
    c_p = jnp.concatenate([zrows(W - 1), o1_p, zrows(W + 1)], axis=0)
    im2 = jnp.concatenate([c_m, c_0, c_p], axis=1)                # (HW+2W, 3*GW)

    r = jnp.dot(im2, w2_ref[...], preferred_element_type=jnp.float32)
    acc = (r[0:HW, 0:GW]
           + r[W:W + HW, GW:2 * GW]
           + r[2 * W:2 * W + HW, 2 * GW:3 * GW])
    o2 = jnp.maximum(acc + sc_ref[1:2, 0:GW], 0.0)                # (HW, GW) f32

    # ---- GAP -> fc1(+bn) -> relu -> fc2 -> sigmoid (rSoftMax, radix=1) ------
    gap = jnp.sum(o2, axis=0, keepdims=True) * (1.0 / HW)         # (1, GW) f32
    a = jnp.dot(gap.astype(jnp.bfloat16), fc1_ref[...],
                preferred_element_type=jnp.float32) + sc_ref[2:3, 0:INTER]
    a = jnp.maximum(a, 0.0)
    att = jax.nn.sigmoid(
        jnp.dot(a.astype(jnp.bfloat16), fc2_ref[...],
                preferred_element_type=jnp.float32) + sc_ref[3:4, 0:GW])

    # ---- atten * out, conv3 (1x1, bn3 scale pre-folded) + residual + relu ---
    ya = (o2 * att).astype(jnp.bfloat16)
    z = jnp.dot(ya, w3_ref[...], preferred_element_type=jnp.float32)
    z = z + sc_ref[4:5, 0:COUT] + xs.astype(jnp.float32)          # Cin == Cout
    o_ref[0] = jnp.maximum(z, 0.0)


def bottleneck_forward(x_nchw, p):
    """Fused forward of Bottleneck(inplanes, planes, radix=1, cardinality=1,
    stride=1, dilation=1, avd=False, downsample=None); BatchNorm (eval mode)
    folded into the preceding weights / per-channel biases."""
    x = jnp.transpose(x_nchw, (0, 2, 3, 1)).astype(jnp.float32)   # NCHW -> NHWC
    N, H, W, Cin = x.shape
    gw = p['w1'].shape[1]
    inter = p['fc1_w'].shape[1]
    Cout = p['w3'].shape[1]
    # downsample is None => residual = x, so inplanes must equal planes * 4.
    assert Cin == Cout, "downsample=None requires inplanes == planes * 4"
    HW = H * W

    # ---- host-side folding: BN scales into weights, all biases into 1 block -
    w1f = (p['w1'] * p['bn1_s']).astype(jnp.bfloat16)             # (Cin, gw)
    w2s = p['w2'] * p['bn0_s']                                    # scale out-ch
    # Rearrange the 9 taps into the (dx, in) x (dy, out) im2col weight layout.
    w2r = jnp.transpose(w2s.reshape(3, 3, gw, gw),
                        (1, 2, 0, 3)).reshape(3 * gw, 3 * gw).astype(jnp.bfloat16)
    fc1f = (p['fc1_w'] * p['bn1b_s']).astype(jnp.bfloat16)        # (gw, inter)
    fc2f = p['fc2_w'].astype(jnp.bfloat16)                        # (inter, gw)
    w3f = (p['w3'] * p['bn3_s']).astype(jnp.bfloat16)             # (gw, Cout)

    cmax = max(gw, inter, Cout)

    def _row(v):
        v = jnp.asarray(v, jnp.float32).reshape(-1)
        return jnp.pad(v, (0, cmax - v.shape[0]))

    sc = jnp.stack([_row(p['bn1_b']),                              # conv1 bias
                    _row(p['bn0_b']),                              # conv2 bias
                    _row(p['fc1_b'] * p['bn1b_s'] + p['bn1b_b']),  # fc1+bn bias
                    _row(p['fc2_b']),                              # fc2 bias
                    _row(p['bn3_b']),                              # conv3 bias
                    jnp.zeros((cmax,), jnp.float32),
                    jnp.zeros((cmax,), jnp.float32),
                    jnp.zeros((cmax,), jnp.float32)])              # (8, cmax)

    x_bf = x.reshape(N, HW, Cin).astype(jnp.bfloat16)

    kern = functools.partial(_bottleneck_kernel, H=H, W=W, GW=gw,
                             INTER=inter, COUT=Cout)
    out = pl.pallas_call(
        kern,
        out_shape=jax.ShapeDtypeStruct((N, HW, Cout), jnp.float32),
        grid=(N,),
        in_specs=[
            pl.BlockSpec((1, HW, Cin), lambda n: (n, 0, 0)),       # x (bf16)
            pl.BlockSpec((Cin, gw), lambda n: (0, 0)),             # conv1 w
            pl.BlockSpec((3 * gw, 3 * gw), lambda n: (0, 0)),      # 3x3 w (im2col)
            pl.BlockSpec((gw, inter), lambda n: (0, 0)),           # fc1 w
            pl.BlockSpec((inter, gw), lambda n: (0, 0)),           # fc2 w
            pl.BlockSpec((gw, Cout), lambda n: (0, 0)),            # conv3 w
            pl.BlockSpec((8, cmax), lambda n: (0, 0)),             # packed biases
        ],
        out_specs=pl.BlockSpec((1, HW, Cout), lambda n: (n, 0, 0)),
        compiler_params=pltpu.CompilerParams(
            dimension_semantics=("parallel",),      # N>=2 -> both v7x cores
            vmem_limit_bytes=32 * 1024 * 1024),     # safe on v5e/v6e/v7x
    )(x_bf, w1f, w2r, fc1f, fc2f, w3f, sc)
    return jnp.transpose(out.reshape(N, H, W, Cout), (0, 3, 1, 2))  # back to NCHW


# ------------------------- Pure-JAX reference (check) -------------------------
def reference_forward(x_nchw, p):
    x = jnp.transpose(x_nchw, (0, 2, 3, 1)).astype(jnp.float32)
    N, H, W, _ = x.shape
    o1 = jnp.maximum(jnp.einsum('nhwc,cd->nhwd', x, p['w1']) * p['bn1_s'] + p['bn1_b'], 0.)
    o1p = jnp.pad(o1, ((0, 0), (1, 1), (1, 1), (0, 0)))
    acc = 0.
    for dy in range(3):
        for dx in range(3):
            acc = acc + jnp.einsum('nhwc,cd->nhwd',
                                   o1p[:, dy:dy + H, dx:dx + W, :], p['w2'][dy * 3 + dx])
    o2 = jnp.maximum(acc * p['bn0_s'] + p['bn0_b'], 0.)
    g = jnp.mean(o2, axis=(1, 2))
    a = g @ p['fc1_w'] + p['fc1_b']
    a = jnp.maximum(a * p['bn1b_s'] + p['bn1b_b'], 0.)
    att = jax.nn.sigmoid(a @ p['fc2_w'] + p['fc2_b'])
    ya = o2 * att[:, None, None, :]
    z = jnp.einsum('nhwc,cd->nhwd', ya, p['w3']) * p['bn3_s'] + p['bn3_b'] + x
    return jnp.transpose(jnp.maximum(z, 0.), (0, 3, 1, 2))


if __name__ == "__main__":
    # Shapes implied by the module: inplanes must equal planes*expansion (=4)
    # because downsample is None.
    N, inplanes, planes = 2, 16, 4
    H = W = 16
    cardinality, radix, bottleneck_width = 1, 1, 64
    group_width = int(planes * (bottleneck_width / 64.0)) * cardinality   # 4
    inter = max(group_width * radix // 4, 32)                             # 32
    out_ch = planes * 4                                                   # 16
    eps = 1e-5

    key = jax.random.PRNGKey(0)
    kx, k1, k2, kf1, kf1b, kf2, kf2b, k3 = jax.random.split(key, 8)
    x = jax.random.normal(kx, (N, inplanes, H, W), jnp.float32)

    def bn_fold(c):
        # Eval-mode BatchNorm with PyTorch default init/running stats.
        gamma = jnp.ones((1, c), jnp.float32)
        beta = jnp.zeros((1, c), jnp.float32)
        mean = jnp.zeros((1, c), jnp.float32)
        var = jnp.ones((1, c), jnp.float32)
        s = gamma / jnp.sqrt(var + eps)
        return s, beta - mean * s

    params = {
        'w1': 0.1 * jax.random.normal(k1, (inplanes, group_width), jnp.float32),
        'w2': 0.1 * jax.random.normal(k2, (9, group_width, group_width), jnp.float32),
        'fc1_w': 0.1 * jax.random.normal(kf1, (group_width, inter), jnp.float32),
        'fc1_b': 0.1 * jax.random.normal(kf1b, (1, inter), jnp.float32),
        'fc2_w': 0.1 * jax.random.normal(kf2, (inter, group_width), jnp.float32),
        'fc2_b': 0.1 * jax.random.normal(kf2b, (1, group_width), jnp.float32),
        'w3': 0.1 * jax.random.normal(k3, (group_width, out_ch), jnp.float32),
    }
    params['bn1_s'], params['bn1_b'] = bn_fold(group_width)
    params['bn0_s'], params['bn0_b'] = bn_fold(group_width * radix)
    params['bn1b_s'], params['bn1b_b'] = bn_fold(inter)
    params['bn3_s'], params['bn3_b'] = bn_fold(out_ch)

    out = jax.block_until_ready(bottleneck_forward(x, params))
    ref = reference_forward(x, params)
    assert out.shape == (N, out_ch, H, W)
    err = float(jnp.max(jnp.abs(out - ref)))
    # bf16 matmul operands (f32 accumulate) => relaxed parity vs. the f32 ref.
    assert jnp.allclose(out, ref, rtol=2e-2, atol=2e-2), err
    # TODO(synk): DropBlock2D is unimplementable (raises NotImplementedError in
    # the reference); dropblock_prob=0.0 so it is never used.
    print("KERNEL_OK")
</pallas_src>

<mosaic_0001>
module attributes {stable_mosaic.version = 11 : i64} {
  func.func @_bottleneck_kernel(%arg0: i32, %arg1: memref<1x256x16xbf16, #tpu.memory_space<vmem>>, %arg2: memref<16x4xbf16, #tpu.memory_space<vmem>>, %arg3: memref<12x12xbf16, #tpu.memory_space<vmem>>, %arg4: memref<4x32xbf16, #tpu.memory_space<vmem>>, %arg5: memref<32x4xbf16, #tpu.memory_space<vmem>>, %arg6: memref<4x16xbf16, #tpu.memory_space<vmem>>, %arg7: memref<8x32xf32, #tpu.memory_space<vmem>>, %arg8: memref<1x256x16xf32, #tpu.memory_space<vmem>>) attributes {dimension_semantics = [#tpu.dimension_semantics<parallel>], iteration_bounds = array<i64: 2>, scalar_prefetch = 0 : i64, scratch_operands = 0 : i64, tpu.core_type = #tpu.core_type<tc>, window_params = [{transform_indices = @transform_0, window_bounds = array<i64: 1, 256, 16>}, {pipeline_mode = #tpu.pipeline_mode<synchronous>, transform_indices = @transform_1, window_bounds = array<i64: 16, 4>}, {pipeline_mode = #tpu.pipeline_mode<synchronous>, transform_indices = @transform_2, window_bounds = array<i64: 12, 12>}, {pipeline_mode = #tpu.pipeline_mode<synchronous>, transform_indices = @transform_3, window_bounds = array<i64: 4, 32>}, {pipeline_mode = #tpu.pipeline_mode<synchronous>, transform_indices = @transform_4, window_bounds = array<i64: 32, 4>}, {pipeline_mode = #tpu.pipeline_mode<synchronous>, transform_indices = @transform_5, window_bounds = array<i64: 4, 16>}, {pipeline_mode = #tpu.pipeline_mode<synchronous>, transform_indices = @transform_6, window_bounds = array<i64: 8, 32>}, {transform_indices = @transform_7, window_bounds = array<i64: 1, 256, 16>}]} {
    %c0 = arith.constant 0 : index
    %c0_0 = arith.constant 0 : index
    %c0_1 = arith.constant 0 : index
    %0 = vector.load %arg1[%c0, %c0_0, %c0_1] : memref<1x256x16xbf16, #tpu.memory_space<vmem>>, vector<1x256x16xbf16>
    %1 = vector.shape_cast %0 : vector<1x256x16xbf16> to vector<256x16xbf16>
    %c0_2 = arith.constant 0 : index
    %c0_3 = arith.constant 0 : index
    %2 = vector.load %arg2[%c0_2, %c0_3] : memref<16x4xbf16, #tpu.memory_space<vmem>>, vector<16x4xbf16>
    %cst = arith.constant dense<0.000000e+00> : vector<256x4xf32>
    %3 = tpu.matmul %1, %2, %cst {dimension_numbers = #tpu.dot_dimension_numbers<[1], [0], [0], [1], [0, 0, 1, 1], [], []>} : vector<256x16xbf16>, vector<16x4xbf16>, vector<256x4xf32> -> vector<256x4xf32>
    %c0_4 = arith.constant 0 : index
    %c0_5 = arith.constant 0 : index
    %4 = vector.load %arg7[%c0_4, %c0_5] : memref<8x32xf32, #tpu.memory_space<vmem>>, vector<1x4xf32>
    %5 = vector.broadcast %4 : vector<1x4xf32> to vector<256x4xf32>
    %6 = arith.addf %3, %5 : vector<256x4xf32>
    %cst_6 = arith.constant 0.000000e+00 : f32
    %7 = vector.broadcast %cst_6 : f32 to vector<256x4xf32>
    %8 = arith.maximumf %6, %7 : vector<256x4xf32>
    %9 = tpu.iota {dimensions = array<i32: 0>} : vector<256x1xi32>
    %c16_i32 = arith.constant 16 : i32
    %c0_i32 = arith.constant 0 : i32
    %10 = arith.cmpi eq, %c16_i32, %c0_i32 : i32
    %c1_i32 = arith.constant 1 : i32
    %11 = arith.select %10, %c1_i32, %c16_i32 : i32
    %12 = vector.broadcast %11 : i32 to vector<256x1xi32>
    %13 = arith.remsi %9, %12 : vector<256x1xi32>
    %c0_i32_7 = arith.constant 0 : i32
    %14 = vector.broadcast %c0_i32_7 : i32 to vector<256x1xi32>
    %15 = arith.cmpi ne, %13, %14 : vector<256x1xi32>
    %c0_i32_8 = arith.constant 0 : i32
    %16 = vector.broadcast %c0_i32_8 : i32 to vector<256x1xi32>
    %17 = arith.cmpi slt, %13, %16 : vector<256x1xi32>
    %c0_i32_9 = arith.constant 0 : i32
    %18 = arith.cmpi slt, %11, %c0_i32_9 : i32
    %19 = vector.broadcast %18 : i1 to vector<256x1xi1>
    %20 = vector.broadcast %19 : vector<256x1xi1> to vector<256x1xi1>
    %21 = arith.xori %17, %20 : vector<256x1xi1>
    %22 = arith.andi %21, %15 : vector<256x1xi1>
    %23 = vector.broadcast %11 : i32 to vector<256x1xi32>
    %24 = arith.addi %13, %23 : vector<256x1xi32>
    %25 = arith.select %22, %24, %13 : vector<256x1xi1>, vector<256x1xi32>
    %26 = arith.truncf %8 : vector<256x4xf32> to vector<256x4xbf16>
    %c15_i32 = arith.constant 15 : i32
    %27 = vector.broadcast %c15_i32 : i32 to vector<256x1xi32>
    %28 = arith.cmpi eq, %25, %27 : vector<256x1xi32>
    %cst_10 = arith.constant 0.000000e+00 : f32
    %29 = vector.shape_cast %28 : vector<256x1xi1> to vector<256x1xi1>
    %30 = vector.broadcast %29 : vector<256x1xi1> to vector<256x4xi1>
    %31 = vector.broadcast %cst_10 : f32 to vector<256x4xf32>
    %32 = arith.select %30, %31, %8 : vector<256x4xi1>, vector<256x4xf32>
    %33 = arith.truncf %32 : vector<256x4xf32> to vector<256x4xbf16>
    %c0_i32_11 = arith.constant 0 : i32
    %34 = vector.broadcast %c0_i32_11 : i32 to vector<256x1xi32>
    %35 = arith.cmpi eq, %25, %34 : vector<256x1xi32>
    %cst_12 = arith.constant 0.000000e+00 : f32
    %36 = vector.shape_cast %35 : vector<256x1xi1> to vector<256x1xi1>
    %37 = vector.broadcast %36 : vector<256x1xi1> to vector<256x4xi1>
    %38 = vector.broadcast %cst_12 : f32 to vector<256x4xf32>
    %39 = arith.select %37, %38, %8 : vector<256x4xi1>, vector<256x4xf32>
    %40 = arith.truncf %39 : vector<256x4xf32> to vector<256x4xbf16>
    %cst_13 = arith.constant 0.000000e+00 : bf16
    %41 = vector.broadcast %cst_13 : bf16 to vector<17x4xbf16>
    %cst_14 = arith.constant 0.000000e+00 : bf16
    %42 = vector.broadcast %cst_14 : bf16 to vector<15x4xbf16>
    %43 = tpu.concatenate %41, %33, %42 in 0 : vector<17x4xbf16>, vector<256x4xbf16>, vector<15x4xbf16> -> vector<288x4xbf16>
    %cst_15 = arith.constant 0.000000e+00 : bf16
    %44 = vector.broadcast %cst_15 : bf16 to vector<16x4xbf16>
    %cst_16 = arith.constant 0.000000e+00 : bf16
    %45 = vector.broadcast %cst_16 : bf16 to vector<16x4xbf16>
    %46 = tpu.concatenate %44, %26, %45 in 0 : vector<16x4xbf16>, vector<256x4xbf16>, vector<16x4xbf16> -> vector<288x4xbf16>
    %cst_17 = arith.constant 0.000000e+00 : bf16
    %47 = vector.broadcast %cst_17 : bf16 to vector<15x4xbf16>
    %cst_18 = arith.constant 0.000000e+00 : bf16
    %48 = vector.broadcast %cst_18 : bf16 to vector<17x4xbf16>
    %49 = tpu.concatenate %47, %40, %48 in 0 : vector<15x4xbf16>, vector<256x4xbf16>, vector<17x4xbf16> -> vector<288x4xbf16>
    %50 = tpu.concatenate %43, %46, %49 in 1 : vector<288x4xbf16>, vector<288x4xbf16>, vector<288x4xbf16> -> vector<288x12xbf16>
    %c0_19 = arith.constant 0 : index
    %c0_20 = arith.constant 0 : index
    %51 = vector.load %arg3[%c0_19, %c0_20] : memref<12x12xbf16, #tpu.memory_space<vmem>>, vector<12x12xbf16>
    %cst_21 = arith.constant dense<0.000000e+00> : vector<288x12xf32>
    %52 = tpu.matmul %50, %51, %cst_21 {dimension_numbers = #tpu.dot_dimension_numbers<[1], [0], [0], [1], [0, 0, 1, 1], [], []>} : vector<288x12xbf16>, vector<12x12xbf16>, vector<288x12xf32> -> vector<288x12xf32>
    %53 = vector.extract_strided_slice %52 {offsets = [0, 0], sizes = [256, 4], strides = [1, 1]} : vector<288x12xf32> to vector<256x4xf32>
    %54 = vector.extract_strided_slice %52 {offsets = [16, 4], sizes = [256, 4], strides = [1, 1]} : vector<288x12xf32> to vector<256x4xf32>
    %55 = arith.addf %53, %54 : vector<256x4xf32>
    %56 = vector.extract_strided_slice %52 {offsets = [32, 8], sizes = [256, 4], strides = [1, 1]} : vector<288x12xf32> to vector<256x4xf32>
    %57 = arith.addf %55, %56 : vector<256x4xf32>
    %c1 = arith.constant 1 : index
    %c0_22 = arith.constant 0 : index
    %58 = vector.load %arg7[%c1, %c0_22] : memref<8x32xf32, #tpu.memory_space<vmem>>, vector<1x4xf32>
    %59 = vector.broadcast %58 : vector<1x4xf32> to vector<256x4xf32>
    %60 = arith.addf %57, %59 : vector<256x4xf32>
    %cst_23 = arith.constant 0.000000e+00 : f32
    %61 = vector.broadcast %cst_23 : f32 to vector<256x4xf32>
    %62 = arith.maximumf %60, %61 : vector<256x4xf32>
    %cst_24 = arith.constant dense<0.000000e+00> : vector<4xf32>
    %63 = vector.multi_reduction <add>, %62, %cst_24 [0] : vector<256x4xf32> to vector<4xf32>
    %64 = vector.shape_cast %63 : vector<4xf32> to vector<1x4xf32>
    %cst_25 = arith.constant 3.906250e-03 : f32
    %65 = vector.broadcast %cst_25 : f32 to vector<1x4xf32>
    %66 = arith.mulf %64, %65 : vector<1x4xf32>
    %67 = arith.truncf %66 : vector<1x4xf32> to vector<1x4xbf16>
    %c0_26 = arith.constant 0 : index
    %c0_27 = arith.constant 0 : index
    %68 = vector.load %arg4[%c0_26, %c0_27] : memref<4x32xbf16, #tpu.memory_space<vmem>>, vector<4x32xbf16>
    %cst_28 = arith.constant dense<0.000000e+00> : vector<1x32xf32>
    %69 = tpu.matmul %67, %68, %cst_28 {dimension_numbers = #tpu.dot_dimension_numbers<[1], [0], [0], [1], [0, 0, 1, 1], [], []>} : vector<1x4xbf16>, vector<4x32xbf16>, vector<1x32xf32> -> vector<1x32xf32>
    %c2 = arith.constant 2 : index
    %c0_29 = arith.constant 0 : index
    %70 = vector.load %arg7[%c2, %c0_29] : memref<8x32xf32, #tpu.memory_space<vmem>>, vector<1x32xf32>
    %71 = arith.addf %69, %70 : vector<1x32xf32>
    %cst_30 = arith.constant 0.000000e+00 : f32
    %72 = vector.broadcast %cst_30 : f32 to vector<1x32xf32>
    %73 = arith.maximumf %71, %72 : vector<1x32xf32>
    %74 = arith.truncf %73 : vector<1x32xf32> to vector<1x32xbf16>
    %c0_31 = arith.constant 0 : index
    %c0_32 = arith.constant 0 : index
    %75 = vector.load %arg5[%c0_31, %c0_32] : memref<32x4xbf16, #tpu.memory_space<vmem>>, vector<32x4xbf16>
    %cst_33 = arith.constant dense<0.000000e+00> : vector<1x4xf32>
    %76 = tpu.matmul %74, %75, %cst_33 {dimension_numbers = #tpu.dot_dimension_numbers<[1], [0], [0], [1], [0, 0, 1, 1], [], []>} : vector<1x32xbf16>, vector<32x4xbf16>, vector<1x4xf32> -> vector<1x4xf32>
    %c3 = arith.constant 3 : index
    %c0_34 = arith.constant 0 : index
    %77 = vector.load %arg7[%c3, %c0_34] : memref<8x32xf32, #tpu.memory_space<vmem>>, vector<1x4xf32>
    %78 = arith.addf %76, %77 : vector<1x4xf32>
    %79 = arith.negf %78 : vector<1x4xf32>
    %80 = math.exp %79 : vector<1x4xf32>
    %cst_35 = arith.constant 1.000000e+00 : f32
    %81 = vector.broadcast %cst_35 : f32 to vector<1x4xf32>
    %82 = arith.addf %81, %80 : vector<1x4xf32>
    %83 = arith.divf %81, %82 : vector<1x4xf32>
    %84 = vector.broadcast %83 : vector<1x4xf32> to vector<256x4xf32>
    %85 = arith.mulf %62, %84 : vector<256x4xf32>
    %86 = arith.truncf %85 : vector<256x4xf32> to vector<256x4xbf16>
    %c0_36 = arith.constant 0 : index
    %c0_37 = arith.constant 0 : index
    %87 = vector.load %arg6[%c0_36, %c0_37] : memref<4x16xbf16, #tpu.memory_space<vmem>>, vector<4x16xbf16>
    %cst_38 = arith.constant dense<0.000000e+00> : vector<256x16xf32>
    %88 = tpu.matmul %86, %87, %cst_38 {dimension_numbers = #tpu.dot_dimension_numbers<[1], [0], [0], [1], [0, 0, 1, 1], [], []>} : vector<256x4xbf16>, vector<4x16xbf16>, vector<256x16xf32> -> vector<256x16xf32>
    %c4 = arith.constant 4 : index
    %c0_39 = arith.constant 0 : index
    %89 = vector.load %arg7[%c4, %c0_39] : memref<8x32xf32, #tpu.memory_space<vmem>>, vector<1x16xf32>
    %90 = vector.broadcast %89 : vector<1x16xf32> to vector<256x16xf32>
    %91 = arith.addf %88, %90 : vector<256x16xf32>
    %92 = arith.extf %1 : vector<256x16xbf16> to vector<256x16xf32>
    %93 = arith.addf %91, %92 : vector<256x16xf32>
    %cst_40 = arith.constant 0.000000e+00 : f32
    %94 = vector.broadcast %cst_40 : f32 to vector<256x16xf32>
    %95 = arith.maximumf %93, %94 : vector<256x16xf32>
    %c0_41 = arith.constant 0 : index
    %c0_42 = arith.constant 0 : index
    %c0_43 = arith.constant 0 : index
    %96 = vector.load %arg8[%c0_41, %c0_42, %c0_43] : memref<1x256x16xf32, #tpu.memory_space<vmem>>, vector<1x256x16xf32>
    %97 = vector.shape_cast %96 : vector<1x256x16xf32> to vector<256x16xf32>
    %98 = vector.shape_cast %95 : vector<256x16xf32> to vector<1x256x16xf32>
    tpu.vector_store %arg8[%c0_41, %c0_42, %c0_43], %98 {strides = array<i32>} : memref<1x256x16xf32, #tpu.memory_space<vmem>>, vector<1x256x16xf32>,
    return
  }
  func.func @transform_0(%arg0: i32) -> (i32, i32, i32) {
    %c0_i32 = arith.constant 0 : i32
    %c0_i32_0 = arith.constant 0 : i32
    %c0_i32_1 = arith.constant 0 : i32
    return %arg0, %c0_i32, %c0_i32_0 : i32, i32, i32
  }
  func.func @transform_1(%arg0: i32) -> (i32, i32) {
    %c0_i32 = arith.constant 0 : i32
    %c0_i32_0 = arith.constant 0 : i32
    %c0_i32_1 = arith.constant 0 : i32
    return %c0_i32, %c0_i32_0 : i32, i32
  }
  func.func @transform_2(%arg0: i32) -> (i32, i32) {
    %c0_i32 = arith.constant 0 : i32
    %c0_i32_0 = arith.constant 0 : i32
    %c0_i32_1 = arith.constant 0 : i32
    return %c0_i32, %c0_i32_0 : i32, i32
  }
  func.func @transform_3(%arg0: i32) -> (i32, i32) {
    %c0_i32 = arith.constant 0 : i32
    %c0_i32_0 = arith.constant 0 : i32
    %c0_i32_1 = arith.constant 0 : i32
    return %c0_i32, %c0_i32_0 : i32, i32
  }
  func.func @transform_4(%arg0: i32) -> (i32, i32) {
    %c0_i32 = arith.constant 0 : i32
    %c0_i32_0 = arith.constant 0 : i32
    %c0_i32_1 = arith.constant 0 : i32
    return %c0_i32, %c0_i32_0 : i32, i32
  }
  func.func @transform_5(%arg0: i32) -> (i32, i32) {
    %c0_i32 = arith.constant 0 : i32
    %c0_i32_0 = arith.constant 0 : i32
    %c0_i32_1 = arith.constant 0 : i32
    return %c0_i32, %c0_i32_0 : i32, i32
  }
  func.func @transform_6(%arg0: i32) -> (i32, i32) {
    %c0_i32 = arith.constant 0 : i32
    %c0_i32_0 = arith.constant 0 : i32
    %c0_i32_1 = arith.constant 0 : i32
    return %c0_i32, %c0_i32_0 : i32, i32
  }
  func.func @transform_7(%arg0: i32) -> (i32, i32, i32) {
    %c0_i32 = arith.constant 0 : i32
    %c0_i32_0 = arith.constant 0 : i32
    %c0_i32_1 = arith.constant 0 : i32
    return %arg0, %c0_i32, %c0_i32_0 : i32, i32, i32
  }
}

</mosaic_0001>

<llo_original>
// kernel: tpu_custom_call.1
$region0: #{tpu_custom_call.1}
  #allocation0 [shape = 'u32[]', space=smem, size = 0x4, offset = 0x4, fixed_abs, tag = 'smem constant byte address 0x4 - core index']
  #allocation1 [shape = 'u32[72,128]{1,0:T(1,128)}', space=vmem, size = 0x9000, scoped, tag = 'internal scratch']
  %s0 = inlined_call_operand.vmem [shape: bf16[2,256,16], index: 0, kind: input, shape index: {}]
  %s1 = inlined_call_operand.vmem [shape: bf16[16,4], index: 1, kind: input, shape index: {}]
  %s2 = inlined_call_operand.vmem [shape: bf16[12,12], index: 2, kind: input, shape index: {}]
  %s3 = inlined_call_operand.vmem [shape: bf16[4,32], index: 3, kind: input, shape index: {}]
  %s4 = inlined_call_operand.vmem [shape: bf16[32,4], index: 4, kind: input, shape index: {}]
  %s5 = inlined_call_operand.vmem [shape: bf16[4,16], index: 5, kind: input, shape index: {}]
  %s6 = inlined_call_operand.vmem [shape: f32[8,32], index: 6, kind: input, shape index: {}]
  %s7 = inlined_call_operand.vmem [shape: f32[2,256,16], index: 7, kind: output, shape index: {}]
  %s8 = sld [smem:[#allocation0]]
  $region61: #{tpu_custom_call.1} parent=0
    _
  %s10 = ssub.s32 1, %s8
  %s11 = scalar_select 0, %s10, %s8
  loop: start=0, step=1, limit=4
  $region2: #{tpu_custom_call.1} parent=0 // loop_pre_header
    _
  $region3: #{tpu_custom_call.1} parent=0 // loop_header
    %s13 = sphi 0, %s17
    %p14 = scmp.ge.s32.totalorder %s13, 4
    %s23 = sphi 0, %s25
    %s26 = sphi 0, %s23
    %s27 = sphi 0, %s26
    %s43 = sphi 0, %s27
    %s47 = sphi 0, %s47
    %s49 = sphi 0, %s47
    %s50 = sphi 0, %s49
    %s64 = sphi 0, %s50
    %s68 = sphi 0, %s68
    %s70 = sphi 0, %s68
    %s71 = sphi 0, %s70
    %s85 = sphi 0, %s71
    %s89 = sphi 0, %s89
    %s91 = sphi 0, %s89
    %s92 = sphi 0, %s91
    %s106 = sphi 0, %s92
    %s110 = sphi 0, %s110
    %s112 = sphi 0, %s110
    %s113 = sphi 0, %s112
    %s127 = sphi 0, %s113
    %s131 = sphi 0, %s131
    %s133 = sphi 0, %s131
    %s134 = sphi 0, %s133
    %s148 = sphi 0, %s134
    %s152 = sphi 0, %s152
    %s154 = sphi 0, %s152
    %s155 = sphi 0, %s154
    %s169 = sphi 0, %s155
    %s175 = sphi 0, %s177
    %s178 = sphi 0, %s175
    %s179 = sphi 0, %s178
    %s195 = sphi 0, %s179
  $region4: #{tpu_custom_call.1} parent=0 // loop_header_branch
    %16 = sbr.rel (%p14) target = $region8
  $region5: #{tpu_custom_call.1} parent=0 // loop_body
    %s18 = ssub.s32 %s13, 1
    %s19 = ssub.s32 %s13, 2
    %s20 = sadd.s32 %s13, 1
    %s21 = ssub.s32 %s13, %s20
    %p22 = scmp.eq.s32.totalorder %s21, 0
    %s24 = sadd.s32 %s23, 1
    %s25 = scalar_select %p22, %s23, %s24
    %p28 = pneg %p22
    %p29 = scmp.eq.s32.totalorder %s13, 1
    %p30 = por %p28, %p29
    %p31 = scmp.ne.s32.totalorder %s23, %s26
    %p32 = scmp.eq.s32.totalorder %s13, 0
    %p33 = por %p31, %p32
    %p34 = scmp.ne.s32.totalorder %s23, %s26
    %p35 = scmp.eq.s32.totalorder %s18, 1
    %p36 = por %p34, %p35
    %p37 = scmp.ne.s32.totalorder %s26, %s27
    %p38 = scmp.eq.s32.totalorder %s18, 0
    %p39 = por %p37, %p38
    %p40 = scmp.ne.s32.totalorder %s26, %s27
    %p41 = scmp.eq.s32.totalorder %s19, 1
    %p42 = por %p40, %p41
    %p44 = scmp.ne.s32.totalorder %s27, %s43
    %p45 = scmp.eq.s32.totalorder %s19, 0
    %p46 = por %p44, %p45
    %s48 = sadd.s32 %s47, 1
    %p51 = scmp.eq.s32.totalorder %s13, 1
    %p52 = scmp.ne.s32.totalorder %s47, %s49
    %p53 = scmp.eq.s32.totalorder %s13, 0
    %p54 = por %p52, %p53
    %p55 = scmp.ne.s32.totalorder %s47, %s49
    %p56 = scmp.eq.s32.totalorder %s18, 1
    %p57 = por %p55, %p56
    %p58 = scmp.ne.s32.totalorder %s49, %s50
    %p59 = scmp.eq.s32.totalorder %s18, 0
    %p60 = por %p58, %p59
    %p61 = scmp.ne.s32.totalorder %s49, %s50
    %p62 = scmp.eq.s32.totalorder %s19, 1
    %p63 = por %p61, %p62
    %p65 = scmp.ne.s32.totalorder %s50, %s64
    %p66 = scmp.eq.s32.totalorder %s19, 0
    %p67 = por %p65, %p66
    %s69 = sadd.s32 %s68, 1
    %p72 = scmp.eq.s32.totalorder %s13, 1
    %p73 = scmp.ne.s32.totalorder %s68, %s70
    %p74 = scmp.eq.s32.totalorder %s13, 0
    %p75 = por %p73, %p74
    %p76 = scmp.ne.s32.totalorder %s68, %s70
    %p77 = scmp.eq.s32.totalorder %s18, 1
    %p78 = por %p76, %p77
    %p79 = scmp.ne.s32.totalorder %s70, %s71
    %p80 = scmp.eq.s32.totalorder %s18, 0
    %p81 = por %p79, %p80
    %p82 = scmp.ne.s32.totalorder %s70, %s71
    %p83 = scmp.eq.s32.totalorder %s19, 1
    %p84 = por %p82, %p83
    %p86 = scmp.ne.s32.totalorder %s71, %s85
    %p87 = scmp.eq.s32.totalorder %s19, 0
    %p88 = por %p86, %p87
    %s90 = sadd.s32 %s89, 1
    %p93 = scmp.eq.s32.totalorder %s13, 1
    %p94 = scmp.ne.s32.totalorder %s89, %s91
    %p95 = scmp.eq.s32.totalorder %s13, 0
    %p96 = por %p94, %p95
    %p97 = scmp.ne.s32.totalorder %s89, %s91
    %p98 = scmp.eq.s32.totalorder %s18, 1
    %p99 = por %p97, %p98
    %p100 = scmp.ne.s32.totalorder %s91, %s92
    %p101 = scmp.eq.s32.totalorder %s18, 0
    %p102 = por %p100, %p101
    %p103 = scmp.ne.s32.totalorder %s91, %s92
    %p104 = scmp.eq.s32.totalorder %s19, 1
    %p105 = por %p103, %p104
    %p107 = scmp.ne.s32.totalorder %s92, %s106
    %p108 = scmp.eq.s32.totalorder %s19, 0
    %p109 = por %p107, %p108
    %s111 = sadd.s32 %s110, 1
    %p114 = scmp.eq.s32.totalorder %s13, 1
    %p115 = scmp.ne.s32.totalorder %s110, %s112
    %p116 = scmp.eq.s32.totalorder %s13, 0
    %p117 = por %p115, %p116
    %p118 = scmp.ne.s32.totalorder %s110, %s112
    %p119 = scmp.eq.s32.totalorder %s18, 1
    %p120 = por %p118, %p119
    %p121 = scmp.ne.s32.totalorder %s112, %s113
    %p122 = scmp.eq.s32.totalorder %s18, 0
    %p123 = por %p121, %p122
    %p124 = scmp.ne.s32.totalorder %s112, %s113
    %p125 = scmp.eq.s32.totalorder %s19, 1
    %p126 = por %p124, %p125
    %p128 = scmp.ne.s32.totalorder %s113, %s127
    %p129 = scmp.eq.s32.totalorder %s19, 0
    %p130 = por %p128, %p129
    %s132 = sadd.s32 %s131, 1
    %p135 = scmp.eq.s32.totalorder %s13, 1
    %p136 = scmp.ne.s32.totalorder %s131, %s133
    %p137 = scmp.eq.s32.totalorder %s13, 0
    %p138 = por %p136, %p137
    %p139 = scmp.ne.s32.totalorder %s131, %s133
    %p140 = scmp.eq.s32.totalorder %s18, 1
    %p141 = por %p139, %p140
    %p142 = scmp.ne.s32.totalorder %s133, %s134
    %p143 = scmp.eq.s32.totalorder %s18, 0
    %p144 = por %p142, %p143
    %p145 = scmp.ne.s32.totalorder %s133, %s134
    %p146 = scmp.eq.s32.totalorder %s19, 1
    %p147 = por %p145, %p146
    %p149 = scmp.ne.s32.totalorder %s134, %s148
    %p150 = scmp.eq.s32.totalorder %s19, 0
    %p151 = por %p149, %p150
    %s153 = sadd.s32 %s152, 1
    %p156 = scmp.eq.s32.totalorder %s13, 1
    %p157 = scmp.ne.s32.totalorder %s152, %s154
    %p158 = scmp.eq.s32.totalorder %s13, 0
    %p159 = por %p157, %p158
    %p160 = scmp.ne.s32.totalorder %s152, %s154
    %p161 = scmp.eq.s32.totalorder %s18, 1
    %p162 = por %p160, %p161
    %p163 = scmp.ne.s32.totalorder %s154, %s155
    %p164 = scmp.eq.s32.totalorder %s18, 0
    %p165 = por %p163, %p164
    %p166 = scmp.ne.s32.totalorder %s154, %s155
    %p167 = scmp.eq.s32.totalorder %s19, 1
    %p168 = por %p166, %p167
    %p170 = scmp.ne.s32.totalorder %s155, %s169
    %p171 = scmp.eq.s32.totalorder %s19, 0
    %p172 = por %p170, %p171
    %s173 = ssub.s32 %s13, %s20
    %p174 = scmp.eq.s32.totalorder %s173, 0
    %s176 = sadd.s32 %s175, 1
    %s177 = scalar_select %p174, %s175, %s176
    %p180 = pneg %p174
    %p181 = scmp.eq.s32.totalorder %s13, 1
    %p182 = por %p180, %p181
    %p183 = scmp.ne.s32.totalorder %s175, %s178
    %p184 = scmp.eq.s32.totalorder %s13, 0
    %p185 = por %p183, %p184
    %p186 = scmp.ne.s32.totalorder %s175, %s178
    %p187 = scmp.eq.s32.totalorder %s18, 1
    %p188 = por %p186, %p187
    %p189 = scmp.ne.s32.totalorder %s178, %s179
    %p190 = scmp.eq.s32.totalorder %s18, 0
    %p191 = por %p189, %p190
    %p192 = scmp.ne.s32.totalorder %s178, %s179
    %p193 = scmp.eq.s32.totalorder %s19, 1
    %p194 = por %p192, %p193
    %p196 = scmp.ne.s32.totalorder %s179, %s195
    %p197 = scmp.eq.s32.totalorder %s19, 0
    %p198 = por %p196, %p197
    %p199 = scmp.le.s32.totalorder 1, %s13
    %p200 = scmp.lt.s32.totalorder %s13, 3
    %p201 = pnand %p199, %p200
    %p202 = pneg %p201
    // Predicated region
    $region9: #{tpu_custom_call.1} parent=5 // pred_check
      _
    $region10: #{tpu_custom_call.1} parent=5 // pred_check_branch
      %204 = sbr.rel (%p201) target = $region12
    $region11: #{tpu_custom_call.1} parent=5 // pred_region
      %s205 = ssub.s32 %s13, 1
      // Predicated region
      $region13: #{tpu_custom_call.1} parent=11 // pred_check
        %p206 = pneg %p60
      $region14: #{tpu_custom_call.1} parent=11 // pred_check_branch
        %208 = sbr.rel (%p206) target = $region16
      $region15: #{tpu_custom_call.1} parent=11 // pred_region
        _
      $region16: #{tpu_custom_call.1} parent=11 // pred_fallthru
        _
      // Predicated region
      $region17: #{tpu_custom_call.1} parent=11 // pred_check
        %p209 = pneg %p81
      $region18: #{tpu_custom_call.1} parent=11 // pred_check_branch
        %211 = sbr.rel (%p209) target = $region20
      $region19: #{tpu_custom_call.1} parent=11 // pred_region
        _
      $region20: #{tpu_custom_call.1} parent=11 // pred_fallthru
        _
      // Predicated region
      $region21: #{tpu_custom_call.1} parent=11 // pred_check
        %p212 = pneg %p102
      $region22: #{tpu_custom_call.1} parent=11 // pred_check_branch
        %214 = sbr.rel (%p212) target = $region24
      $region23: #{tpu_custom_call.1} parent=11 // pred_region
        _
      $region24: #{tpu_custom_call.1} parent=11 // pred_fallthru
        _
      // Predicated region
      $region25: #{tpu_custom_call.1} parent=11 // pred_check
        %p215 = pneg %p123
      $region26: #{tpu_custom_call.1} parent=11 // pred_check_branch
        %217 = sbr.rel (%p215) target = $region28
      $region27: #{tpu_custom_call.1} parent=11 // pred_region
        _
      $region28: #{tpu_custom_call.1} parent=11 // pred_fallthru
        _
      // Predicated region
      $region29: #{tpu_custom_call.1} parent=11 // pred_check
        %p218 = pneg %p144
      $region30: #{tpu_custom_call.1} parent=11 // pred_check_branch
        %220 = sbr.rel (%p218) target = $region32
      $region31: #{tpu_custom_call.1} parent=11 // pred_region
        _
      $region32: #{tpu_custom_call.1} parent=11 // pred_fallthru
        _
      // Predicated region
      $region33: #{tpu_custom_call.1} parent=11 // pred_check
        %p221 = pneg %p165
      $region34: #{tpu_custom_call.1} parent=11 // pred_check_branch
        %223 = sbr.rel (%p221) target = $region36
      $region35: #{tpu_custom_call.1} parent=11 // pred_region
        _
      $region36: #{tpu_custom_call.1} parent=11 // pred_fallthru
        _
    $region12: #{tpu_custom_call.1} parent=5 // pred_fallthru
      _
    %p224 = scmp.lt.s32.totalorder %s13, 2
    // Predicated region
    $region37: #{tpu_custom_call.1} parent=5 // pred_check
      %p225 = pneg %p224
    $region38: #{tpu_custom_call.1} parent=5 // pred_check_branch
      %227 = sbr.rel (%p225) target = $region40
    $region39: #{tpu_custom_call.1} parent=5 // pred_region
      // Predicated region
      $region41: #{tpu_custom_call.1} parent=39 // pred_check
        %p228 = pneg %p33
      $region42: #{tpu_custom_call.1} parent=39 // pred_check_branch
        %230 = sbr.rel (%p228) target = $region44
      $region43: #{tpu_custom_call.1} parent=39 // pred_region
        %p231 = scmp.lt.s32.totalorder %s13, 1
        %s232 = scalar_select %p231, %s13, 1
        %s233 = smul.addr %s232, 32
        %s234 = smul.addr %s233, 4
        %s235 = scalar_lea.vmem %s0, %s234
      $region44: #{tpu_custom_call.1} parent=39 // pred_fallthru
        _
    $region40: #{tpu_custom_call.1} parent=5 // pred_fallthru
      _
    %p236 = scmp.le.s32.totalorder 1, %s13
    %p237 = scmp.lt.s32.totalorder %s13, 3
    %p238 = pnand %p236, %p237
    %p239 = pneg %p238
    // Predicated region
    $region45: #{tpu_custom_call.1} parent=5 // pred_check
      _
    $region46: #{tpu_custom_call.1} parent=5 // pred_check_branch
      %241 = sbr.rel (%p238) target = $region48
    $region47: #{tpu_custom_call.1} parent=5 // pred_region
      %s242 = ssub.s32 %s13, 1
      %p243 = scmp.lt.s32.totalorder %s18, 1
      %s244 = scalar_select %p243, %s18, 1
      %s245 = smul.addr %s244, 32
      %s246 = smul.addr %s245, 4
      %s247 = scalar_lea.vmem %s0, %s246
      %p248 = pneg %p39
      %p249 = pneg %p36
      %p250 = pneg %p60
      %p251 = pneg %p57
      %p252 = pneg %p81
      %p253 = pneg %p78
      %p254 = pneg %p102
      %p255 = pneg %p99
      %p256 = pneg %p123
      %p257 = pneg %p120
      %p258 = pneg %p144
      %p259 = pneg %p141
      %p260 = pneg %p165
      %p261 = pneg %p162
      %p262 = pneg %p191
      %p263 = pneg %p188
      %p264 = scmp.lt.s32.totalorder %s18, 1
      %s265 = scalar_select %p264, %s18, 1
      %s266 = smul.addr %s265, 32
      %s267 = smul.addr %s266, 8
      %s268 = scalar_lea.vmem %s7, %s267
      %p269 = scmp.lt.s32.totalorder %s18, 1
      %s270 = scalar_select %p269, %s18, 1
      %s271 = smul.addr %s270, 32
      %s272 = smul.addr %s271, 4
      %s273 = scalar_lea.vmem %s0, %s272
      %p274 = scmp.lt.s32.totalorder %s18, 1
      %s275 = scalar_select %p274, %s18, 1
      %s276 = smul.addr %s275, 32
      %s277 = smul.addr %s276, 8
      %s278 = scalar_lea.vmem %s7, %s277
      %v280 = vld [vmem:[%s273] sm:$0xf]
      %v281 = vld [vmem:[%s273 + $0x4] sm:$0xf]
      %v282 = vld [vmem:[%s273 + $0x8] sm:$0xf]
      %v283 = vld [vmem:[%s273 + $0xc] sm:$0xf]
      %v284 = vld [vmem:[%s273 + $0x10] sm:$0xf]
      %v285 = vld [vmem:[%s273 + $0x14] sm:$0xf]
      %v286 = vld [vmem:[%s273 + $0x18] sm:$0xf]
      %v287 = vld [vmem:[%s273 + $0x1c] sm:$0xf]
      %v288 = vld [vmem:[%s273 + $0x20] sm:$0xf]
      %v289 = vld [vmem:[%s273 + $0x24] sm:$0xf]
      %v290 = vld [vmem:[%s273 + $0x28] sm:$0xf]
      %v291 = vld [vmem:[%s273 + $0x2c] sm:$0xf]
      %v292 = vld [vmem:[%s273 + $0x30] sm:$0xf]
      %v293 = vld [vmem:[%s273 + $0x34] sm:$0xf]
      %v294 = vld [vmem:[%s273 + $0x38] sm:$0xf]
      %v295 = vld [vmem:[%s273 + $0x3c] sm:$0xf]
      %v296 = vld [vmem:[%s273 + $0x40] sm:$0xf]
      %v297 = vld [vmem:[%s273 + $0x44] sm:$0xf]
      %v298 = vld [vmem:[%s273 + $0x48] sm:$0xf]
      %v299 = vld [vmem:[%s273 + $0x4c] sm:$0xf]
      %v300 = vld [vmem:[%s273 + $0x50] sm:$0xf]
      %v301 = vld [vmem:[%s273 + $0x54] sm:$0xf]
      %v302 = vld [vmem:[%s273 + $0x58] sm:$0xf]
      %v303 = vld [vmem:[%s273 + $0x5c] sm:$0xf]
      %v304 = vld [vmem:[%s273 + $0x60] sm:$0xf]
      %v305 = vld [vmem:[%s273 + $0x64] sm:$0xf]
      %v306 = vld [vmem:[%s273 + $0x68] sm:$0xf]
      %v307 = vld [vmem:[%s273 + $0x6c] sm:$0xf]
      %v308 = vld [vmem:[%s273 + $0x70] sm:$0xf]
      %v309 = vld [vmem:[%s273 + $0x74] sm:$0xf]
      %v310 = vld [vmem:[%s273 + $0x78] sm:$0xf]
      %v311 = vld [vmem:[%s273 + $0x7c] sm:$0xf]
      %v312 = vld [vmem:[%s1] sm:$0xf]
      %v313 = vld [vmem:[%s1 + $0x4] sm:$0xf]
      %v314 = vld [vmem:[%s6] sm:$0x1]
      %v315 = vperm.slane %v314, 0
      %v348 = vunpack.c.l.b16 %v280
      %v349 = vunpack.c.l.b16 %v281
      %v350 = vunpack.c.l.b16 %v282
      %v351 = vunpack.c.l.b16 %v283
      %v352 = vunpack.c.l.b16 %v284
      %v353 = vunpack.c.l.b16 %v285
      %v354 = vunpack.c.l.b16 %v286
      %v355 = vunpack.c.l.b16 %v287
      %v356 = vunpack.c.l.b16 %v288
      %v357 = vunpack.c.l.b16 %v289
      %v358 = vunpack.c.l.b16 %v290
      %v359 = vunpack.c.l.b16 %v291
      %v360 = vunpack.c.l.b16 %v292
      %v361 = vunpack.c.l.b16 %v293
      %v362 = vunpack.c.l.b16 %v294
      %v363 = vunpack.c.l.b16 %v295
      %v364 = vunpack.c.l.b16 %v296
      %v365 = vunpack.c.l.b16 %v297
      %v366 = vunpack.c.l.b16 %v298
      %v367 = vunpack.c.l.b16 %v299
      %v368 = vunpack.c.l.b16 %v300
      %v369 = vunpack.c.l.b16 %v301
      %v370 = vunpack.c.l.b16 %v302
      %v371 = vunpack.c.l.b16 %v303
      %v372 = vunpack.c.l.b16 %v304
      %v373 = vunpack.c.l.b16 %v305
      %v374 = vunpack.c.l.b16 %v306
      %v375 = vunpack.c.l.b16 %v307
      %v376 = vunpack.c.l.b16 %v308
      %v377 = vunpack.c.l.b16 %v309
      %v378 = vunpack.c.l.b16 %v310
      %v379 = vunpack.c.l.b16 %v311
      %v380 = vpack.c.b16 %v349, %v348
      %v381 = vpack.c.b16 %v351, %v350
      %v382 = vpack.c.b16 %v353, %v352
      %v383 = vpack.c.b16 %v355, %v354
      %v384 = vpack.c.b16 %v357, %v356
      %v385 = vpack.c.b16 %v359, %v358
      %v386 = vpack.c.b16 %v361, %v360
      %v387 = vpack.c.b16 %v363, %v362
      %v388 = vpack.c.b16 %v365, %v364
      %v389 = vpack.c.b16 %v367, %v366
      %v390 = vpack.c.b16 %v369, %v368
      %v391 = vpack.c.b16 %v371, %v370
      %v392 = vpack.c.b16 %v373, %v372
      %v393 = vpack.c.b16 %v375, %v374
      %v394 = vpack.c.b16 %v377, %v376
      %v395 = vpack.c.b16 %v379, %v378
      %v398 = vunpack.c.l.b16 %v312
      %v399 = vunpack.c.l.b16 %v313
      %v400 = vpack.c.b16 %v399, %v398
      %vm402 = vcmask 130048
      %v404 = vsel %vm402, %v380, 0
      %v407 = vsel %vm402, %v381, 0
      %v410 = vsel %vm402, %v382, 0
      %v413 = vsel %vm402, %v383, 0
      %v416 = vsel %vm402, %v384, 0
      %v419 = vsel %vm402, %v385, 0
      %v422 = vsel %vm402, %v386, 0
      %v425 = vsel %vm402, %v387, 0
      %v428 = vsel %vm402, %v388, 0
      %v431 = vsel %vm402, %v389, 0
      %v434 = vsel %vm402, %v390, 0
      %v437 = vsel %vm402, %v391, 0
      %v440 = vsel %vm402, %v392, 0
      %v443 = vsel %vm402, %v393, 0
      %v446 = vsel %vm402, %v394, 0
      %v449 = vsel %vm402, %v395, 0
      %451 = vmatpush.bf16.msra.mxu0 0
      %452 = vmatpush.bf16.msra.mxu0 0
      %453 = vmatpush.bf16.msra.mxu0 0
      %454 = vmatpush.bf16.msra.mxu0 0
      %455 = vmatpush.bf16.msra.mxu0 0
      %456 = vmatpush.bf16.msra.mxu0 0
      %457 = vmatpush.bf16.msra.mxu0 0
      %458 = vmatpush.bf16.msra.mxu0 %v400
      %459 = vmatmul.bf16.gmra.mxu0 %v404
      %v460 = vpop.f32.mrf.mxu0
      %v461 = vadd.f32 %v315, %v460
      %v462 = vpop.f32.mrf.mxu0
      %v463 = vadd.f32 %v315, %v462
      %464 = vmatmul.bf16.gmra.mxu0 %v407
      %v465 = vpop.f32.mrf.mxu0
      %v466 = vadd.f32 %v315, %v465
      %v467 = vpop.f32.mrf.mxu0
      %v468 = vadd.f32 %v315, %v467
      %469 = vmatmul.bf16.gmra.mxu0 %v410
      %v470 = vpop.f32.mrf.mxu0
      %v471 = vadd.f32 %v315, %v470
      %v472 = vpop.f32.mrf.mxu0
      %v473 = vadd.f32 %v315, %v472
      %474 = vmatmul.bf16.gmra.mxu0 %v413
      %v475 = vpop.f32.mrf.mxu0
      %v476 = vadd.f32 %v315, %v475
      %v477 = vpop.f32.mrf.mxu0
      %v478 = vadd.f32 %v315, %v477
      %479 = vmatmul.bf16.gmra.mxu0 %v416
      %v480 = vpop.f32.mrf.mxu0
      %v481 = vadd.f32 %v315, %v480
      %v482 = vpop.f32.mrf.mxu0
      %v483 = vadd.f32 %v315, %v482
      %484 = vmatmul.bf16.gmra.mxu0 %v419
      %v485 = vpop.f32.mrf.mxu0
      %v486 = vadd.f32 %v315, %v485
      %v487 = vpop.f32.mrf.mxu0
      %v488 = vadd.f32 %v315, %v487
      %489 = vmatmul.bf16.gmra.mxu0 %v422
      %v490 = vpop.f32.mrf.mxu0
      %v491 = vadd.f32 %v315, %v490
      %v492 = vpop.f32.mrf.mxu0
      %v493 = vadd.f32 %v315, %v492
      %494 = vmatmul.bf16.gmra.mxu0 %v425
      %v495 = vpop.f32.mrf.mxu0
      %v496 = vadd.f32 %v315, %v495
      %v497 = vpop.f32.mrf.mxu0
      %v498 = vadd.f32 %v315, %v497
      %499 = vmatmul.bf16.gmra.mxu0 %v428
      %v500 = vpop.f32.mrf.mxu0
      %v501 = vadd.f32 %v315, %v500
      %v502 = vpop.f32.mrf.mxu0
      %v503 = vadd.f32 %v315, %v502
      %504 = vmatmul.bf16.gmra.mxu0 %v431
      %v505 = vpop.f32.mrf.mxu0
      %v506 = vadd.f32 %v315, %v505
      %v507 = vpop.f32.mrf.mxu0
      %v508 = vadd.f32 %v315, %v507
      %509 = vmatmul.bf16.gmra.mxu0 %v434
      %v510 = vpop.f32.mrf.mxu0
      %v511 = vadd.f32 %v315, %v510
      %v512 = vpop.f32.mrf.mxu0
      %v513 = vadd.f32 %v315, %v512
      %514 = vmatmul.bf16.gmra.mxu0 %v437
      %v515 = vpop.f32.mrf.mxu0
      %v516 = vadd.f32 %v315, %v515
      %v517 = vpop.f32.mrf.mxu0
      %v518 = vadd.f32 %v315, %v517
      %519 = vmatmul.bf16.gmra.mxu0 %v440
      %v520 = vpop.f32.mrf.mxu0
      %v521 = vadd.f32 %v315, %v520
      %v522 = vpop.f32.mrf.mxu0
      %v523 = vadd.f32 %v315, %v522
      %524 = vmatmul.bf16.gmra.mxu0 %v443
      %v525 = vpop.f32.mrf.mxu0
      %v526 = vadd.f32 %v315, %v525
      %v527 = vpop.f32.mrf.mxu0
      %v528 = vadd.f32 %v315, %v527
      %529 = vmatmul.bf16.gmra.mxu0 %v446
      %v530 = vpop.f32.mrf.mxu0
      %v531 = vadd.f32 %v315, %v530
      %v532 = vpop.f32.mrf.mxu0
      %v533 = vadd.f32 %v315, %v532
      %534 = vmatmul.bf16.gmra.mxu0 %v449
      %v535 = vpop.f32.mrf.mxu0
      %v536 = vadd.f32 %v315, %v535
      %v537 = vpop.f32.mrf.mxu0
      %v538 = vadd.f32 %v315, %v537
      %539 = vdwg.mxu0
      %v540 = vmax.f32 %v461, 0.0
      %v541 = vmax.f32 %v463, 0.0
      %v542 = vmax.f32 %v466, 0.0
      %v543 = vmax.f32 %v468, 0.0
      %v544 = vmax.f32 %v471, 0.0
      %v545 = vmax.f32 %v473, 0.0
      %v546 = vmax.f32 %v476, 0.0
      %v547 = vmax.f32 %v478, 0.0
      %v548 = vmax.f32 %v481, 0.0
      %v549 = vmax.f32 %v483, 0.0
      %v550 = vmax.f32 %v486, 0.0
      %v551 = vmax.f32 %v488, 0.0
      %v552 = vmax.f32 %v491, 0.0
      %v553 = vmax.f32 %v493, 0.0
      %v554 = vmax.f32 %v496, 0.0
      %v555 = vmax.f32 %v498, 0.0
      %v556 = vmax.f32 %v501, 0.0
      %v557 = vmax.f32 %v503, 0.0
      %v558 = vmax.f32 %v506, 0.0
      %v559 = vmax.f32 %v508, 0.0
      %v560 = vmax.f32 %v511, 0.0
      %v561 = vmax.f32 %v513, 0.0
      %v562 = vmax.f32 %v516, 0.0
      %v563 = vmax.f32 %v518, 0.0
      %v564 = vmax.f32 %v521, 0.0
      %v565 = vmax.f32 %v523, 0.0
      %v566 = vmax.f32 %v526, 0.0
      %v567 = vmax.f32 %v528, 0.0
      %v568 = vmax.f32 %v531, 0.0
      %v569 = vmax.f32 %v533, 0.0
      %v570 = vmax.f32 %v536, 0.0
      %v571 = vmax.f32 %v538, 0.0
      %v572 = vlaneseq
      %v573 = vshrl.u32 %v572, 7
      %v574 = vadd.s32 %v573, 8
      %v575 = vadd.s32 %v573, 16
      %v576 = vadd.s32 %v573, 24
      %v577 = vadd.s32 %v573, 32
      %v578 = vadd.s32 %v573, 40
      %v579 = vadd.s32 %v573, 48
      %v580 = vadd.s32 %v573, 56
      %v581 = vadd.s32 %v573, 64
      %v582 = vadd.s32 %v573, 72
      %v583 = vadd.s32 %v573, 80
      %v584 = vadd.s32 %v573, 88
      %v585 = vadd.s32 %v573, 96
      %v586 = vadd.s32 %v573, 104
      %v587 = vadd.s32 %v573, 112
      %v588 = vadd.s32 %v573, 120
      %v589 = vadd.s32 %v573, 128
      %v590 = vadd.s32 %v573, 136
      %v591 = vadd.s32 %v573, 144
      %v592 = vadd.s32 %v573, 152
      %v593 = vadd.s32 %v573, 160
      %v594 = vadd.s32 %v573, 168
      %v595 = vadd.s32 %v573, 176
      %v596 = vadd.s32 %v573, 184
      %v597 = vadd.s32 %v573, 192
      %v598 = vadd.s32 %v573, 200
      %v599 = vadd.s32 %v573, 208
      %v600 = vadd.s32 %v573, 216
      %v601 = vadd.s32 %v573, 224
      %v602 = vadd.s32 %v573, 232
      %v603 = vadd.s32 %v573, 240
      %v604 = vadd.s32 %v573, 248
      %vm605 = vcmp.lt.s32.totalorder %v573, 0
      %v606 = vsub.s32 0, %v573
      %v607 = vsel %vm605, %v606, %v573
      %v608 = vshrl.u32 %v607, 4
      %v609 = vand.u32 %v607, 15
      %v610 = vsub.s32 0, %v609
      %v611 = vsel %vm605, %v610, %v609
      %vm612 = vcmp.lt.s32.totalorder %v574, 0
      %v613 = vsub.s32 0, %v574
      %v614 = vsel %vm612, %v613, %v574
      %v615 = vshrl.u32 %v614, 4
      %v616 = vand.u32 %v614, 15
      %v617 = vsub.s32 0, %v616
      %v618 = vsel %vm612, %v617, %v616
      %vm619 = vcmp.lt.s32.totalorder %v575, 0
      %v620 = vsub.s32 0, %v575
      %v621 = vsel %vm619, %v620, %v575
      %v622 = vshrl.u32 %v621, 4
      %v623 = vand.u32 %v621, 15
      %v624 = vsub.s32 0, %v623
      %v625 = vsel %vm619, %v624, %v623
      %vm626 = vcmp.lt.s32.totalorder %v576, 0
      %v627 = vsub.s32 0, %v576
      %v628 = vsel %vm626, %v627, %v576
      %v629 = vshrl.u32 %v628, 4
      %v630 = vand.u32 %v628, 15
      %v631 = vsub.s32 0, %v630
      %v632 = vsel %vm626, %v631, %v630
      %vm633 = vcmp.lt.s32.totalorder %v577, 0
      %v634 = vsub.s32 0, %v577
      %v635 = vsel %vm633, %v634, %v577
      %v636 = vshrl.u32 %v635, 4
      %v637 = vand.u32 %v635, 15
      %v638 = vsub.s32 0, %v637
      %v639 = vsel %vm633, %v638, %v637
      %vm640 = vcmp.lt.s32.totalorder %v578, 0
      %v641 = vsub.s32 0, %v578
      %v642 = vsel %vm640, %v641, %v578
      %v643 = vshrl.u32 %v642, 4
      %v644 = vand.u32 %v642, 15
      %v645 = vsub.s32 0, %v644
      %v646 = vsel %vm640, %v645, %v644
      %vm647 = vcmp.lt.s32.totalorder %v579, 0
      %v648 = vsub.s32 0, %v579
      %v649 = vsel %vm647, %v648, %v579
      %v650 = vshrl.u32 %v649, 4
      %v651 = vand.u32 %v649, 15
      %v652 = vsub.s32 0, %v651
      %v653 = vsel %vm647, %v652, %v651
      %vm654 = vcmp.lt.s32.totalorder %v580, 0
      %v655 = vsub.s32 0, %v580
      %v656 = vsel %vm654, %v655, %v580
      %v657 = vshrl.u32 %v656, 4
      %v658 = vand.u32 %v656, 15
      %v659 = vsub.s32 0, %v658
      %v660 = vsel %vm654, %v659, %v658
      %vm661 = vcmp.lt.s32.totalorder %v581, 0
      %v662 = vsub.s32 0, %v581
      %v663 = vsel %vm661, %v662, %v581
      %v664 = vshrl.u32 %v663, 4
      %v665 = vand.u32 %v663, 15
      %v666 = vsub.s32 0, %v665
      %v667 = vsel %vm661, %v666, %v665
      %vm668 = vcmp.lt.s32.totalorder %v582, 0
      %v669 = vsub.s32 0, %v582
      %v670 = vsel %vm668, %v669, %v582
      %v671 = vshrl.u32 %v670, 4
      %v672 = vand.u32 %v670, 15
      %v673 = vsub.s32 0, %v672
      %v674 = vsel %vm668, %v673, %v672
      %vm675 = vcmp.lt.s32.totalorder %v583, 0
      %v676 = vsub.s32 0, %v583
      %v677 = vsel %vm675, %v676, %v583
      %v678 = vshrl.u32 %v677, 4
      %v679 = vand.u32 %v677, 15
      %v680 = vsub.s32 0, %v679
      %v681 = vsel %vm675, %v680, %v679
      %vm682 = vcmp.lt.s32.totalorder %v584, 0
      %v683 = vsub.s32 0, %v584
      %v684 = vsel %vm682, %v683, %v584
      %v685 = vshrl.u32 %v684, 4
      %v686 = vand.u32 %v684, 15
      %v687 = vsub.s32 0, %v686
      %v688 = vsel %vm682, %v687, %v686
      %vm689 = vcmp.lt.s32.totalorder %v585, 0
      %v690 = vsub.s32 0, %v585
      %v691 = vsel %vm689, %v690, %v585
      %v692 = vshrl.u32 %v691, 4
      %v693 = vand.u32 %v691, 15
      %v694 = vsub.s32 0, %v693
      %v695 = vsel %vm689, %v694, %v693
      %vm696 = vcmp.lt.s32.totalorder %v586, 0
      %v697 = vsub.s32 0, %v586
      %v698 = vsel %vm696, %v697, %v586
      %v699 = vshrl.u32 %v698, 4
      %v700 = vand.u32 %v698, 15
      %v701 = vsub.s32 0, %v700
      %v702 = vsel %vm696, %v701, %v700
      %vm703 = vcmp.lt.s32.totalorder %v587, 0
      %v704 = vsub.s32 0, %v587
      %v705 = vsel %vm703, %v704, %v587
      %v706 = vshrl.u32 %v705, 4
      %v707 = vand.u32 %v705, 15
      %v708 = vsub.s32 0, %v707
      %v709 = vsel %vm703, %v708, %v707
      %vm710 = vcmp.lt.s32.totalorder %v588, 0
      %v711 = vsub.s32 0, %v588
      %v712 = vsel %vm710, %v711, %v588
      %v713 = vshrl.u32 %v712, 4
      %v714 = vand.u32 %v712, 15
      %v715 = vsub.s32 0, %v714
      %v716 = vsel %vm710, %v715, %v714
      %vm717 = vcmp.lt.s32.totalorder %v589, 0
      %v718 = vsub.s32 0, %v589
      %v719 = vsel %vm717, %v718, %v589
      %v720 = vshrl.u32 %v719, 4
      %v721 = vand.u32 %v719, 15
      %v722 = vsub.s32 0, %v721
      %v723 = vsel %vm717, %v722, %v721
      %vm724 = vcmp.lt.s32.totalorder %v590, 0
      %v725 = vsub.s32 0, %v590
      %v726 = vsel %vm724, %v725, %v590
      %v727 = vshrl.u32 %v726, 4
      %v728 = vand.u32 %v726, 15
      %v729 = vsub.s32 0, %v728
      %v730 = vsel %vm724, %v729, %v728
      %vm731 = vcmp.lt.s32.totalorder %v591, 0
      %v732 = vsub.s32 0, %v591
      %v733 = vsel %vm731, %v732, %v591
      %v734 = vshrl.u32 %v733, 4
      %v735 = vand.u32 %v733, 15
      %v736 = vsub.s32 0, %v735
      %v737 = vsel %vm731, %v736, %v735
      %vm738 = vcmp.lt.s32.totalorder %v592, 0
      %v739 = vsub.s32 0, %v592
      %v740 = vsel %vm738, %v739, %v592
      %v741 = vshrl.u32 %v740, 4
      %v742 = vand.u32 %v740, 15
      %v743 = vsub.s32 0, %v742
      %v744 = vsel %vm738, %v743, %v742
      %vm745 = vcmp.lt.s32.totalorder %v593, 0
      %v746 = vsub.s32 0, %v593
      %v747 = vsel %vm745, %v746, %v593
      %v748 = vshrl.u32 %v747, 4
      %v749 = vand.u32 %v747, 15
      %v750 = vsub.s32 0, %v749
      %v751 = vsel %vm745, %v750, %v749
      %vm752 = vcmp.lt.s32.totalorder %v594, 0
      %v753 = vsub.s32 0, %v594
      %v754 = vsel %vm752, %v753, %v594
      %v755 = vshrl.u32 %v754, 4
      %v756 = vand.u32 %v754, 15
      %v757 = vsub.s32 0, %v756
      %v758 = vsel %vm752, %v757, %v756
      %vm759 = vcmp.lt.s32.totalorder %v595, 0
      %v760 = vsub.s32 0, %v595
      %v761 = vsel %vm759, %v760, %v595
      %v762 = vshrl.u32 %v761, 4
      %v763 = vand.u32 %v761, 15
      %v764 = vsub.s32 0, %v763
      %v765 = vsel %vm759, %v764, %v763
      %vm766 = vcmp.lt.s32.totalorder %v596, 0
      %v767 = vsub.s32 0, %v596
      %v768 = vsel %vm766, %v767, %v596
      %v769 = vshrl.u32 %v768, 4
      %v770 = vand.u32 %v768, 15
      %v771 = vsub.s32 0, %v770
      %v772 = vsel %vm766, %v771, %v770
      %vm773 = vcmp.lt.s32.totalorder %v597, 0
      %v774 = vsub.s32 0, %v597
      %v775 = vsel %vm773, %v774, %v597
      %v776 = vshrl.u32 %v775, 4
      %v777 = vand.u32 %v775, 15
      %v778 = vsub.s32 0, %v777
      %v779 = vsel %vm773, %v778, %v777
      %vm780 = vcmp.lt.s32.totalorder %v598, 0
      %v781 = vsub.s32 0, %v598
      %v782 = vsel %vm780, %v781, %v598
      %v783 = vshrl.u32 %v782, 4
      %v784 = vand.u32 %v782, 15
      %v785 = vsub.s32 0, %v784
      %v786 = vsel %vm780, %v785, %v784
      %vm787 = vcmp.lt.s32.totalorder %v599, 0
      %v788 = vsub.s32 0, %v599
      %v789 = vsel %vm787, %v788, %v599
      %v790 = vshrl.u32 %v789, 4
      %v791 = vand.u32 %v789, 15
      %v792 = vsub.s32 0, %v791
      %v793 = vsel %vm787, %v792, %v791
      %vm794 = vcmp.lt.s32.totalorder %v600, 0
      %v795 = vsub.s32 0, %v600
      %v796 = vsel %vm794, %v795, %v600
      %v797 = vshrl.u32 %v796, 4
      %v798 = vand.u32 %v796, 15
      %v799 = vsub.s32 0, %v798
      %v800 = vsel %vm794, %v799, %v798
      %vm801 = vcmp.lt.s32.totalorder %v601, 0
      %v802 = vsub.s32 0, %v601
      %v803 = vsel %vm801, %v802, %v601
      %v804 = vshrl.u32 %v803, 4
      %v805 = vand.u32 %v803, 15
      %v806 = vsub.s32 0, %v805
      %v807 = vsel %vm801, %v806, %v805
      %vm808 = vcmp.lt.s32.totalorder %v602, 0
      %v809 = vsub.s32 0, %v602
      %v810 = vsel %vm808, %v809, %v602
      %v811 = vshrl.u32 %v810, 4
      %v812 = vand.u32 %v810, 15
      %v813 = vsub.s32 0, %v812
      %v814 = vsel %vm808, %v813, %v812
      %vm815 = vcmp.lt.s32.totalorder %v603, 0
      %v816 = vsub.s32 0, %v603
      %v817 = vsel %vm815, %v816, %v603
      %v818 = vshrl.u32 %v817, 4
      %v819 = vand.u32 %v817, 15
      %v820 = vsub.s32 0, %v819
      %v821 = vsel %vm815, %v820, %v819
      %vm822 = vcmp.lt.s32.totalorder %v604, 0
      %v823 = vsub.s32 0, %v604
      %v824 = vsel %vm822, %v823, %v604
      %v825 = vshrl.u32 %v824, 4
      %v826 = vand.u32 %v824, 15
      %v827 = vsub.s32 0, %v826
      %v828 = vsel %vm822, %v827, %v826
      %vm829 = vcmp.ne.s32.totalorder %v611, 0
      %vm830 = vcmp.ne.s32.totalorder %v618, 0
      %vm831 = vcmp.ne.s32.totalorder %v625, 0
      %vm832 = vcmp.ne.s32.totalorder %v632, 0
      %vm833 = vcmp.ne.s32.totalorder %v639, 0
      %vm834 = vcmp.ne.s32.totalorder %v646, 0
      %vm835 = vcmp.ne.s32.totalorder %v653, 0
      %vm836 = vcmp.ne.s32.totalorder %v660, 0
      %vm837 = vcmp.ne.s32.totalorder %v667, 0
      %vm838 = vcmp.ne.s32.totalorder %v674, 0
      %vm839 = vcmp.ne.s32.totalorder %v681, 0
      %vm840 = vcmp.ne.s32.totalorder %v688, 0
      %vm841 = vcmp.ne.s32.totalorder %v695, 0
      %vm842 = vcmp.ne.s32.totalorder %v702, 0
      %vm843 = vcmp.ne.s32.totalorder %v709, 0
      %vm844 = vcmp.ne.s32.totalorder %v716, 0
      %vm845 = vcmp.ne.s32.totalorder %v723, 0
      %vm846 = vcmp.ne.s32.totalorder %v730, 0
      %vm847 = vcmp.ne.s32.totalorder %v737, 0
      %vm848 = vcmp.ne.s32.totalorder %v744, 0
      %vm849 = vcmp.ne.s32.totalorder %v751, 0
      %vm850 = vcmp.ne.s32.totalorder %v758, 0
      %vm851 = vcmp.ne.s32.totalorder %v765, 0
      %vm852 = vcmp.ne.s32.totalorder %v772, 0
      %vm853 = vcmp.ne.s32.totalorder %v779, 0
      %vm854 = vcmp.ne.s32.totalorder %v786, 0
      %vm855 = vcmp.ne.s32.totalorder %v793, 0
      %vm856 = vcmp.ne.s32.totalorder %v800, 0
      %vm857 = vcmp.ne.s32.totalorder %v807, 0
      %vm858 = vcmp.ne.s32.totalorder %v814, 0
      %vm859 = vcmp.ne.s32.totalorder %v821, 0
      %vm860 = vcmp.ne.s32.totalorder %v828, 0
      %vm861 = vcmp.lt.s32.totalorder %v611, 0
      %vm862 = vcmp.lt.s32.totalorder %v618, 0
      %vm863 = vcmp.lt.s32.totalorder %v625, 0
      %vm864 = vcmp.lt.s32.totalorder %v632, 0
      %vm865 = vcmp.lt.s32.totalorder %v639, 0
      %vm866 = vcmp.lt.s32.totalorder %v646, 0
      %vm867 = vcmp.lt.s32.totalorder %v653, 0
      %vm868 = vcmp.lt.s32.totalorder %v660, 0
      %vm869 = vcmp.lt.s32.totalorder %v667, 0
      %vm870 = vcmp.lt.s32.totalorder %v674, 0
      %vm871 = vcmp.lt.s32.totalorder %v681, 0
      %vm872 = vcmp.lt.s32.totalorder %v688, 0
      %vm873 = vcmp.lt.s32.totalorder %v695, 0
      %vm874 = vcmp.lt.s32.totalorder %v702, 0
      %vm875 = vcmp.lt.s32.totalorder %v709, 0
      %vm876 = vcmp.lt.s32.totalorder %v716, 0
      %vm877 = vcmp.lt.s32.totalorder %v723, 0
      %vm878 = vcmp.lt.s32.totalorder %v730, 0
      %vm879 = vcmp.lt.s32.totalorder %v737, 0
      %vm880 = vcmp.lt.s32.totalorder %v744, 0
      %vm881 = vcmp.lt.s32.totalorder %v751, 0
      %vm882 = vcmp.lt.s32.totalorder %v758, 0
      %vm883 = vcmp.lt.s32.totalorder %v765, 0
      %vm884 = vcmp.lt.s32.totalorder %v772, 0
      %vm885 = vcmp.lt.s32.totalorder %v779, 0
      %vm886 = vcmp.lt.s32.totalorder %v786, 0
      %vm887 = vcmp.lt.s32.totalorder %v793, 0
      %vm888 = vcmp.lt.s32.totalorder %v800, 0
      %vm889 = vcmp.lt.s32.totalorder %v807, 0
      %vm890 = vcmp.lt.s32.totalorder %v814, 0
      %vm891 = vcmp.lt.s32.totalorder %v821, 0
      %vm892 = vcmp.lt.s32.totalorder %v828, 0
      %vm893 = vmand %vm861, %vm829
      %vm894 = vmand %vm862, %vm830
      %vm895 = vmand %vm863, %vm831
      %vm896 = vmand %vm864, %vm832
      %vm897 = vmand %vm865, %vm833
      %vm898 = vmand %vm866, %vm834
      %vm899 = vmand %vm867, %vm835
      %vm900 = vmand %vm868, %vm836
      %vm901 = vmand %vm869, %vm837
      %vm902 = vmand %vm870, %vm838
      %vm903 = vmand %vm871, %vm839
      %vm904 = vmand %vm872, %vm840
      %vm905 = vmand %vm873, %vm841
      %vm906 = vmand %vm874, %vm842
      %vm907 = vmand %vm875, %vm843
      %vm908 = vmand %vm876, %vm844
      %vm909 = vmand %vm877, %vm845
      %vm910 = vmand %vm878, %vm846
      %vm911 = vmand %vm879, %vm847
      %vm912 = vmand %vm880, %vm848
      %vm913 = vmand %vm881, %vm849
      %vm914 = vmand %vm882, %vm850
      %vm915 = vmand %vm883, %vm851
      %vm916 = vmand %vm884, %vm852
      %vm917 = vmand %vm885, %vm853
      %vm918 = vmand %vm886, %vm854
      %vm919 = vmand %vm887, %vm855
      %vm920 = vmand %vm888, %vm856
      %vm921 = vmand %vm889, %vm857
      %vm922 = vmand %vm890, %vm858
      %vm923 = vmand %vm891, %vm859
      %vm924 = vmand %vm892, %vm860
      %v925 = vadd.s32 %v611, 16
      %v926 = vadd.s32 %v618, 16
      %v927 = vadd.s32 %v625, 16
      %v928 = vadd.s32 %v632, 16
      %v929 = vadd.s32 %v639, 16
      %v930 = vadd.s32 %v646, 16
      %v931 = vadd.s32 %v653, 16
      %v932 = vadd.s32 %v660, 16
      %v933 = vadd.s32 %v667, 16
      %v934 = vadd.s32 %v674, 16
      %v935 = vadd.s32 %v681, 16
      %v936 = vadd.s32 %v688, 16
      %v937 = vadd.s32 %v695, 16
      %v938 = vadd.s32 %v702, 16
      %v939 = vadd.s32 %v709, 16
      %v940 = vadd.s32 %v716, 16
      %v941 = vadd.s32 %v723, 16
      %v942 = vadd.s32 %v730, 16
      %v943 = vadd.s32 %v737, 16
      %v944 = vadd.s32 %v744, 16
      %v945 = vadd.s32 %v751, 16
      %v946 = vadd.s32 %v758, 16
      %v947 = vadd.s32 %v765, 16
      %v948 = vadd.s32 %v772, 16
      %v949 = vadd.s32 %v779, 16
      %v950 = vadd.s32 %v786, 16
      %v951 = vadd.s32 %v793, 16
      %v952 = vadd.s32 %v800, 16
      %v953 = vadd.s32 %v807, 16
      %v954 = vadd.s32 %v814, 16
      %v955 = vadd.s32 %v821, 16
      %v956 = vadd.s32 %v828, 16
      %v957 = vsel %vm893, %v925, %v611
      %v958 = vsel %vm894, %v926, %v618
      %v959 = vsel %vm895, %v927, %v625
      %v960 = vsel %vm896, %v928, %v632
      %v961 = vsel %vm897, %v929, %v639
      %v962 = vsel %vm898, %v930, %v646
      %v963 = vsel %vm899, %v931, %v653
      %v964 = vsel %vm900, %v932, %v660
      %v965 = vsel %vm901, %v933, %v667
      %v966 = vsel %vm902, %v934, %v674
      %v967 = vsel %vm903, %v935, %v681
      %v968 = vsel %vm904, %v936, %v688
      %v969 = vsel %vm905, %v937, %v695
      %v970 = vsel %vm906, %v938, %v702
      %v971 = vsel %vm907, %v939, %v709
      %v972 = vsel %vm908, %v940, %v716
      %v973 = vsel %vm909, %v941, %v723
      %v974 = vsel %vm910, %v942, %v730
      %v975 = vsel %vm911, %v943, %v737
      %v976 = vsel %vm912, %v944, %v744
      %v977 = vsel %vm913, %v945, %v751
      %v978 = vsel %vm914, %v946, %v758
      %v979 = vsel %vm915, %v947, %v765
      %v980 = vsel %vm916, %v948, %v772
      %v981 = vsel %vm917, %v949, %v779
      %v982 = vsel %vm918, %v950, %v786
      %v983 = vsel %vm919, %v951, %v793
      %v984 = vsel %vm920, %v952, %v800
      %v985 = vsel %vm921, %v953, %v807
      %v986 = vsel %vm922, %v954, %v814
      %v987 = vsel %vm923, %v955, %v821
      %v988 = vsel %vm924, %v956, %v828
      %v989 = vpack.c.bf16 %v540, %v540
      %v990 = vpack.c.bf16 %v541, %v541
      %v991 = vpack.c.bf16 %v542, %v542
      %v992 = vpack.c.bf16 %v543, %v543
      %v993 = vpack.c.bf16 %v544, %v544
      %v994 = vpack.c.bf16 %v545, %v545
      %v995 = vpack.c.bf16 %v546, %v546
      %v996 = vpack.c.bf16 %v547, %v547
      %v997 = vpack.c.bf16 %v548, %v548
      %v998 = vpack.c.bf16 %v549, %v549
      %v999 = vpack.c.bf16 %v550, %v550
      %v1000 = vpack.c.bf16 %v551, %v551
      %v1001 = vpack.c.bf16 %v552, %v552
      %v1002 = vpack.c.bf16 %v553, %v553
      %v1003 = vpack.c.bf16 %v554, %v554
      %v1004 = vpack.c.bf16 %v555, %v555
      %v1005 = vpack.c.bf16 %v556, %v556
      %v1006 = vpack.c.bf16 %v557, %v557
      %v1007 = vpack.c.bf16 %v558, %v558
      %v1008 = vpack.c.bf16 %v559, %v559
      %v1009 = vpack.c.bf16 %v560, %v560
      %v1010 = vpack.c.bf16 %v561, %v561
      %v1011 = vpack.c.bf16 %v562, %v562
      %v1012 = vpack.c.bf16 %v563, %v563
      %v1013 = vpack.c.bf16 %v564, %v564
      %v1014 = vpack.c.bf16 %v565, %v565
      %v1015 = vpack.c.bf16 %v566, %v566
      %v1016 = vpack.c.bf16 %v567, %v567
      %v1017 = vpack.c.bf16 %v568, %v568
      %v1018 = vpack.c.bf16 %v569, %v569
      %v1019 = vpack.c.bf16 %v570, %v570
      %v1020 = vpack.c.bf16 %v571, %v571
      %vm1021 = vcmp.eq.s32.totalorder %v957, 15
      %vm1022 = vcmp.eq.s32.totalorder %v958, 15
      %vm1023 = vcmp.eq.s32.totalorder %v959, 15
      %vm1024 = vcmp.eq.s32.totalorder %v960, 15
      %vm1025 = vcmp.eq.s32.totalorder %v961, 15
      %vm1026 = vcmp.eq.s32.totalorder %v962, 15
      %vm1027 = vcmp.eq.s32.totalorder %v963, 15
      %vm1028 = vcmp.eq.s32.totalorder %v964, 15
      %vm1029 = vcmp.eq.s32.totalorder %v965, 15
      %vm1030 = vcmp.eq.s32.totalorder %v966, 15
      %vm1031 = vcmp.eq.s32.totalorder %v967, 15
      %vm1032 = vcmp.eq.s32.totalorder %v968, 15
      %vm1033 = vcmp.eq.s32.totalorder %v969, 15
      %vm1034 = vcmp.eq.s32.totalorder %v970, 15
      %vm1035 = vcmp.eq.s32.totalorder %v971, 15
      %vm1036 = vcmp.eq.s32.totalorder %v972, 15
      %vm1037 = vcmp.eq.s32.totalorder %v973, 15
      %vm1038 = vcmp.eq.s32.totalorder %v974, 15
      %vm1039 = vcmp.eq.s32.totalorder %v975, 15
      %vm1040 = vcmp.eq.s32.totalorder %v976, 15
      %vm1041 = vcmp.eq.s32.totalorder %v977, 15
      %vm1042 = vcmp.eq.s32.totalorder %v978, 15
      %vm1043 = vcmp.eq.s32.totalorder %v979, 15
      %vm1044 = vcmp.eq.s32.totalorder %v980, 15
      %vm1045 = vcmp.eq.s32.totalorder %v981, 15
      %vm1046 = vcmp.eq.s32.totalorder %v982, 15
      %vm1047 = vcmp.eq.s32.totalorder %v983, 15
      %vm1048 = vcmp.eq.s32.totalorder %v984, 15
      %vm1049 = vcmp.eq.s32.totalorder %v985, 15
      %vm1050 = vcmp.eq.s32.totalorder %v986, 15
      %vm1051 = vcmp.eq.s32.totalorder %v987, 15
      %vm1052 = vcmp.eq.s32.totalorder %v988, 15
      %v1053 = vsel %vm1021, 1, 0
      %v1054 = vsel %vm1022, 1, 0
      %v1055 = vsel %vm1023, 1, 0
      %v1056 = vsel %vm1024, 1, 0
      %v1057 = vsel %vm1025, 1, 0
      %v1058 = vsel %vm1026, 1, 0
      %v1059 = vsel %vm1027, 1, 0
      %v1060 = vsel %vm1028, 1, 0
      %v1061 = vsel %vm1029, 1, 0
      %v1062 = vsel %vm1030, 1, 0
      %v1063 = vsel %vm1031, 1, 0
      %v1064 = vsel %vm1032, 1, 0
      %v1065 = vsel %vm1033, 1, 0
      %v1066 = vsel %vm1034, 1, 0
      %v1067 = vsel %vm1035, 1, 0
      %v1068 = vsel %vm1036, 1, 0
      %v1069 = vsel %vm1037, 1, 0
      %v1070 = vsel %vm1038, 1, 0
      %v1071 = vsel %vm1039, 1, 0
      %v1072 = vsel %vm1040, 1, 0
      %v1073 = vsel %vm1041, 1, 0
      %v1074 = vsel %vm1042, 1, 0
      %v1075 = vsel %vm1043, 1, 0
      %v1076 = vsel %vm1044, 1, 0
      %v1077 = vsel %vm1045, 1, 0
      %v1078 = vsel %vm1046, 1, 0
      %v1079 = vsel %vm1047, 1, 0
      %v1080 = vsel %vm1048, 1, 0
      %v1081 = vsel %vm1049, 1, 0
      %v1082 = vsel %vm1050, 1, 0
      %v1083 = vsel %vm1051, 1, 0
      %v1084 = vsel %vm1052, 1, 0
      %vm1085 = vcmp.eq.s32.totalorder %v1053, 1
      %vm1086 = vcmp.eq.s32.totalorder %v1054, 1
      %vm1087 = vcmp.eq.s32.totalorder %v1055, 1
      %vm1088 = vcmp.eq.s32.totalorder %v1056, 1
      %vm1089 = vcmp.eq.s32.totalorder %v1057, 1
      %vm1090 = vcmp.eq.s32.totalorder %v1058, 1
      %vm1091 = vcmp.eq.s32.totalorder %v1059, 1
      %vm1092 = vcmp.eq.s32.totalorder %v1060, 1
      %vm1093 = vcmp.eq.s32.totalorder %v1061, 1
      %vm1094 = vcmp.eq.s32.totalorder %v1062, 1
      %vm1095 = vcmp.eq.s32.totalorder %v1063, 1
      %vm1096 = vcmp.eq.s32.totalorder %v1064, 1
      %vm1097 = vcmp.eq.s32.totalorder %v1065, 1
      %vm1098 = vcmp.eq.s32.totalorder %v1066, 1
      %vm1099 = vcmp.eq.s32.totalorder %v1067, 1
      %vm1100 = vcmp.eq.s32.totalorder %v1068, 1
      %vm1101 = vcmp.eq.s32.totalorder %v1069, 1
      %vm1102 = vcmp.eq.s32.totalorder %v1070, 1
      %vm1103 = vcmp.eq.s32.totalorder %v1071, 1
      %vm1104 = vcmp.eq.s32.totalorder %v1072, 1
      %vm1105 = vcmp.eq.s32.totalorder %v1073, 1
      %vm1106 = vcmp.eq.s32.totalorder %v1074, 1
      %vm1107 = vcmp.eq.s32.totalorder %v1075, 1
      %vm1108 = vcmp.eq.s32.totalorder %v1076, 1
      %vm1109 = vcmp.eq.s32.totalorder %v1077, 1
      %vm1110 = vcmp.eq.s32.totalorder %v1078, 1
      %vm1111 = vcmp.eq.s32.totalorder %v1079, 1
      %vm1112 = vcmp.eq.s32.totalorder %v1080, 1
      %vm1113 = vcmp.eq.s32.totalorder %v1081, 1
      %vm1114 = vcmp.eq.s32.totalorder %v1082, 1
      %vm1115 = vcmp.eq.s32.totalorder %v1083, 1
      %vm1116 = vcmp.eq.s32.totalorder %v1084, 1
      %v1117 = vsel %vm1085, 0.0, %v540
      %v1118 = vsel %vm1086, 0.0, %v541
      %v1119 = vsel %vm1087, 0.0, %v542
      %v1120 = vsel %vm1088, 0.0, %v543
      %v1121 = vsel %vm1089, 0.0, %v544
      %v1122 = vsel %vm1090, 0.0, %v545
      %v1123 = vsel %vm1091, 0.0, %v546
      %v1124 = vsel %vm1092, 0.0, %v547
      %v1125 = vsel %vm1093, 0.0, %v548
      %v1126 = vsel %vm1094, 0.0, %v549
      %v1127 = vsel %vm1095, 0.0, %v550
      %v1128 = vsel %vm1096, 0.0, %v551
      %v1129 = vsel %vm1097, 0.0, %v552
      %v1130 = vsel %vm1098, 0.0, %v553
      %v1131 = vsel %vm1099, 0.0, %v554
      %v1132 = vsel %vm1100, 0.0, %v555
      %v1133 = vsel %vm1101, 0.0, %v556
      %v1134 = vsel %vm1102, 0.0, %v557
      %v1135 = vsel %vm1103, 0.0, %v558
      %v1136 = vsel %vm1104, 0.0, %v559
      %v1137 = vsel %vm1105, 0.0, %v560
      %v1138 = vsel %vm1106, 0.0, %v561
      %v1139 = vsel %vm1107, 0.0, %v562
      %v1140 = vsel %vm1108, 0.0, %v563
      %v1141 = vsel %vm1109, 0.0, %v564
      %v1142 = vsel %vm1110, 0.0, %v565
      %v1143 = vsel %vm1111, 0.0, %v566
      %v1144 = vsel %vm1112, 0.0, %v567
      %v1145 = vsel %vm1113, 0.0, %v568
      %v1146 = vsel %vm1114, 0.0, %v569
      %v1147 = vsel %vm1115, 0.0, %v570
      %v1148 = vsel %vm1116, 0.0, %v571
      %v1149 = vpack.c.bf16 %v1117, %v1117
      %v1150 = vpack.c.bf16 %v1118, %v1118
      %v1151 = vpack.c.bf16 %v1119, %v1119
      %v1152 = vpack.c.bf16 %v1120, %v1120
      %v1153 = vpack.c.bf16 %v1121, %v1121
      %v1154 = vpack.c.bf16 %v1122, %v1122
      %v1155 = vpack.c.bf16 %v1123, %v1123
      %v1156 = vpack.c.bf16 %v1124, %v1124
      %v1157 = vpack.c.bf16 %v1125, %v1125
      %v1158 = vpack.c.bf16 %v1126, %v1126
      %v1159 = vpack.c.bf16 %v1127, %v1127
      %v1160 = vpack.c.bf16 %v1128, %v1128
      %v1161 = vpack.c.bf16 %v1129, %v1129
      %v1162 = vpack.c.bf16 %v1130, %v1130
      %v1163 = vpack.c.bf16 %v1131, %v1131
      %v1164 = vpack.c.bf16 %v1132, %v1132
      %v1165 = vpack.c.bf16 %v1133, %v1133
      %v1166 = vpack.c.bf16 %v1134, %v1134
      %v1167 = vpack.c.bf16 %v1135, %v1135
      %v1168 = vpack.c.bf16 %v1136, %v1136
      %v1169 = vpack.c.bf16 %v1137, %v1137
      %v1170 = vpack.c.bf16 %v1138, %v1138
      %v1171 = vpack.c.bf16 %v1139, %v1139
      %v1172 = vpack.c.bf16 %v1140, %v1140
      %v1173 = vpack.c.bf16 %v1141, %v1141
      %v1174 = vpack.c.bf16 %v1142, %v1142
      %v1175 = vpack.c.bf16 %v1143, %v1143
      %v1176 = vpack.c.bf16 %v1144, %v1144
      %v1177 = vpack.c.bf16 %v1145, %v1145
      %v1178 = vpack.c.bf16 %v1146, %v1146
      %v1179 = vpack.c.bf16 %v1147, %v1147
      %v1180 = vpack.c.bf16 %v1148, %v1148
      %vm1181 = vcmp.eq.s32.totalorder %v957, 0
      %vm1182 = vcmp.eq.s32.totalorder %v958, 0
      %vm1183 = vcmp.eq.s32.totalorder %v959, 0
      %vm1184 = vcmp.eq.s32.totalorder %v960, 0
      %vm1185 = vcmp.eq.s32.totalorder %v961, 0
      %vm1186 = vcmp.eq.s32.totalorder %v962, 0
      %vm1187 = vcmp.eq.s32.totalorder %v963, 0
      %vm1188 = vcmp.eq.s32.totalorder %v964, 0
      %vm1189 = vcmp.eq.s32.totalorder %v965, 0
      %vm1190 = vcmp.eq.s32.totalorder %v966, 0
      %vm1191 = vcmp.eq.s32.totalorder %v967, 0
      %vm1192 = vcmp.eq.s32.totalorder %v968, 0
      %vm1193 = vcmp.eq.s32.totalorder %v969, 0
      %vm1194 = vcmp.eq.s32.totalorder %v970, 0
      %vm1195 = vcmp.eq.s32.totalorder %v971, 0
      %vm1196 = vcmp.eq.s32.totalorder %v972, 0
      %vm1197 = vcmp.eq.s32.totalorder %v973, 0
      %vm1198 = vcmp.eq.s32.totalorder %v974, 0
      %vm1199 = vcmp.eq.s32.totalorder %v975, 0
      %vm1200 = vcmp.eq.s32.totalorder %v976, 0
      %vm1201 = vcmp.eq.s32.totalorder %v977, 0
      %vm1202 = vcmp.eq.s32.totalorder %v978, 0
      %vm1203 = vcmp.eq.s32.totalorder %v979, 0
      %vm1204 = vcmp.eq.s32.totalorder %v980, 0
      %vm1205 = vcmp.eq.s32.totalorder %v981, 0
      %vm1206 = vcmp.eq.s32.totalorder %v982, 0
      %vm1207 = vcmp.eq.s32.totalorder %v983, 0
      %vm1208 = vcmp.eq.s32.totalorder %v984, 0
      %vm1209 = vcmp.eq.s32.totalorder %v985, 0
      %vm1210 = vcmp.eq.s32.totalorder %v986, 0
      %vm1211 = vcmp.eq.s32.totalorder %v987, 0
      %vm1212 = vcmp.eq.s32.totalorder %v988, 0
      %v1213 = vsel %vm1181, 1, 0
      %v1214 = vsel %vm1182, 1, 0
      %v1215 = vsel %vm1183, 1, 0
      %v1216 = vsel %vm1184, 1, 0
      %v1217 = vsel %vm1185, 1, 0
      %v1218 = vsel %vm1186, 1, 0
      %v1219 = vsel %vm1187, 1, 0
      %v1220 = vsel %vm1188, 1, 0
      %v1221 = vsel %vm1189, 1, 0
      %v1222 = vsel %vm1190, 1, 0
      %v1223 = vsel %vm1191, 1, 0
      %v1224 = vsel %vm1192, 1, 0
      %v1225 = vsel %vm1193, 1, 0
      %v1226 = vsel %vm1194, 1, 0
      %v1227 = vsel %vm1195, 1, 0
      %v1228 = vsel %vm1196, 1, 0
      %v1229 = vsel %vm1197, 1, 0
      %v1230 = vsel %vm1198, 1, 0
      %v1231 = vsel %vm1199, 1, 0
      %v1232 = vsel %vm1200, 1, 0
      %v1233 = vsel %vm1201, 1, 0
      %v1234 = vsel %vm1202, 1, 0
      %v1235 = vsel %vm1203, 1, 0
      %v1236 = vsel %vm1204, 1, 0
      %v1237 = vsel %vm1205, 1, 0
      %v1238 = vsel %vm1206, 1, 0
      %v1239 = vsel %vm1207, 1, 0
      %v1240 = vsel %vm1208, 1, 0
      %v1241 = vsel %vm1209, 1, 0
      %v1242 = vsel %vm1210, 1, 0
      %v1243 = vsel %vm1211, 1, 0
      %v1244 = vsel %vm1212, 1, 0
      %vm1245 = vcmp.eq.s32.totalorder %v1213, 1
      %vm1246 = vcmp.eq.s32.totalorder %v1214, 1
      %vm1247 = vcmp.eq.s32.totalorder %v1215, 1
      %vm1248 = vcmp.eq.s32.totalorder %v1216, 1
      %vm1249 = vcmp.eq.s32.totalorder %v1217, 1
      %vm1250 = vcmp.eq.s32.totalorder %v1218, 1
      %vm1251 = vcmp.eq.s32.totalorder %v1219, 1
      %vm1252 = vcmp.eq.s32.totalorder %v1220, 1
      %vm1253 = vcmp.eq.s32.totalorder %v1221, 1
      %vm1254 = vcmp.eq.s32.totalorder %v1222, 1
      %vm1255 = vcmp.eq.s32.totalorder %v1223, 1
      %vm1256 = vcmp.eq.s32.totalorder %v1224, 1
      %vm1257 = vcmp.eq.s32.totalorder %v1225, 1
      %vm1258 = vcmp.eq.s32.totalorder %v1226, 1
      %vm1259 = vcmp.eq.s32.totalorder %v1227, 1
      %vm1260 = vcmp.eq.s32.totalorder %v1228, 1
      %vm1261 = vcmp.eq.s32.totalorder %v1229, 1
      %vm1262 = vcmp.eq.s32.totalorder %v1230, 1
      %vm1263 = vcmp.eq.s32.totalorder %v1231, 1
      %vm1264 = vcmp.eq.s32.totalorder %v1232, 1
      %vm1265 = vcmp.eq.s32.totalorder %v1233, 1
      %vm1266 = vcmp.eq.s32.totalorder %v1234, 1
      %vm1267 = vcmp.eq.s32.totalorder %v1235, 1
      %vm1268 = vcmp.eq.s32.totalorder %v1236, 1
      %vm1269 = vcmp.eq.s32.totalorder %v1237, 1
      %vm1270 = vcmp.eq.s32.totalorder %v1238, 1
      %vm1271 = vcmp.eq.s32.totalorder %v1239, 1
      %vm1272 = vcmp.eq.s32.totalorder %v1240, 1
      %vm1273 = vcmp.eq.s32.totalorder %v1241, 1
      %vm1274 = vcmp.eq.s32.totalorder %v1242, 1
      %vm1275 = vcmp.eq.s32.totalorder %v1243, 1
      %vm1276 = vcmp.eq.s32.totalorder %v1244, 1
      %v1277 = vsel %vm1245, 0.0, %v540
      %v1278 = vsel %vm1246, 0.0, %v541
      %v1279 = vsel %vm1247, 0.0, %v542
      %v1280 = vsel %vm1248, 0.0, %v543
      %v1281 = vsel %vm1249, 0.0, %v544
      %v1282 = vsel %vm1250, 0.0, %v545
      %v1283 = vsel %vm1251, 0.0, %v546
      %v1284 = vsel %vm1252, 0.0, %v547
      %v1285 = vsel %vm1253, 0.0, %v548
      %v1286 = vsel %vm1254, 0.0, %v549
      %v1287 = vsel %vm1255, 0.0, %v550
      %v1288 = vsel %vm1256, 0.0, %v551
      %v1289 = vsel %vm1257, 0.0, %v552
      %v1290 = vsel %vm1258, 0.0, %v553
      %v1291 = vsel %vm1259, 0.0, %v554
      %v1292 = vsel %vm1260, 0.0, %v555
      %v1293 = vsel %vm1261, 0.0, %v556
      %v1294 = vsel %vm1262, 0.0, %v557
      %v1295 = vsel %vm1263, 0.0, %v558
      %v1296 = vsel %vm1264, 0.0, %v559
      %v1297 = vsel %vm1265, 0.0, %v560
      %v1298 = vsel %vm1266, 0.0, %v561
      %v1299 = vsel %vm1267, 0.0, %v562
      %v1300 = vsel %vm1268, 0.0, %v563
      %v1301 = vsel %vm1269, 0.0, %v564
      %v1302 = vsel %vm1270, 0.0, %v565
      %v1303 = vsel %vm1271, 0.0, %v566
      %v1304 = vsel %vm1272, 0.0, %v567
      %v1305 = vsel %vm1273, 0.0, %v568
      %v1306 = vsel %vm1274, 0.0, %v569
      %v1307 = vsel %vm1275, 0.0, %v570
      %v1308 = vsel %vm1276, 0.0, %v571
      %v1309 = vpack.c.bf16 %v1277, %v1277
      %v1310 = vpack.c.bf16 %v1278, %v1278
      %v1311 = vpack.c.bf16 %v1279, %v1279
      %v1312 = vpack.c.bf16 %v1280, %v1280
      %v1313 = vpack.c.bf16 %v1281, %v1281
      %v1314 = vpack.c.bf16 %v1282, %v1282
      %v1315 = vpack.c.bf16 %v1283, %v1283
      %v1316 = vpack.c.bf16 %v1284, %v1284
      %v1317 = vpack.c.bf16 %v1285, %v1285
      %v1318 = vpack.c.bf16 %v1286, %v1286
      %v1319 = vpack.c.bf16 %v1287, %v1287
      %v1320 = vpack.c.bf16 %v1288, %v1288
      %v1321 = vpack.c.bf16 %v1289, %v1289
      %v1322 = vpack.c.bf16 %v1290, %v1290
      %v1323 = vpack.c.bf16 %v1291, %v1291
      %v1324 = vpack.c.bf16 %v1292, %v1292
      %v1325 = vpack.c.bf16 %v1293, %v1293
      %v1326 = vpack.c.bf16 %v1294, %v1294
      %v1327 = vpack.c.bf16 %v1295, %v1295
      %v1328 = vpack.c.bf16 %v1296, %v1296
      %v1329 = vpack.c.bf16 %v1297, %v1297
      %v1330 = vpack.c.bf16 %v1298, %v1298
      %v1331 = vpack.c.bf16 %v1299, %v1299
      %v1332 = vpack.c.bf16 %v1300, %v1300
      %v1333 = vpack.c.bf16 %v1301, %v1301
      %v1334 = vpack.c.bf16 %v1302, %v1302
      %v1335 = vpack.c.bf16 %v1303, %v1303
      %v1336 = vpack.c.bf16 %v1304, %v1304
      %v1337 = vpack.c.bf16 %v1305, %v1305
      %v1338 = vpack.c.bf16 %v1306, %v1306
      %v1339 = vpack.c.bf16 %v1307, %v1307
      %v1340 = vpack.c.bf16 %v1308, %v1308
      %v1373 = vunpack.c.l.b16 %v1149
      %v1374 = vunpack.c.l.b16 %v1150
      %v1375 = vunpack.c.l.b16 %v1151
      %v1376 = vunpack.c.l.b16 %v1152
      %v1377 = vunpack.c.l.b16 %v1153
      %v1378 = vunpack.c.l.b16 %v1154
      %v1379 = vunpack.c.l.b16 %v1155
      %v1380 = vunpack.c.l.b16 %v1156
      %v1381 = vunpack.c.l.b16 %v1157
      %v1382 = vunpack.c.l.b16 %v1158
      %v1383 = vunpack.c.l.b16 %v1159
      %v1384 = vunpack.c.l.b16 %v1160
      %v1385 = vunpack.c.l.b16 %v1161
      %v1386 = vunpack.c.l.b16 %v1162
      %v1387 = vunpack.c.l.b16 %v1163
      %v1388 = vunpack.c.l.b16 %v1164
      %v1389 = vunpack.c.l.b16 %v1165
      %v1390 = vunpack.c.l.b16 %v1166
      %v1391 = vunpack.c.l.b16 %v1167
      %v1392 = vunpack.c.l.b16 %v1168
      %v1393 = vunpack.c.l.b16 %v1169
      %v1394 = vunpack.c.l.b16 %v1170
      %v1395 = vunpack.c.l.b16 %v1171
      %v1396 = vunpack.c.l.b16 %v1172
      %v1397 = vunpack.c.l.b16 %v1173
      %v1398 = vunpack.c.l.b16 %v1174
      %v1399 = vunpack.c.l.b16 %v1175
      %v1400 = vunpack.c.l.b16 %v1176
      %v1401 = vunpack.c.l.b16 %v1177
      %v1402 = vunpack.c.l.b16 %v1178
      %v1403 = vunpack.c.l.b16 %v1179
      %v1404 = vunpack.c.l.b16 %v1180
      %v1405 = vpack.c.b16 %v1374, %v1373
      %v1406 = vpack.c.b16 %v1376, %v1375
      %v1407 = vpack.c.b16 %v1378, %v1377
      %v1408 = vpack.c.b16 %v1380, %v1379
      %v1409 = vpack.c.b16 %v1382, %v1381
      %v1410 = vpack.c.b16 %v1384, %v1383
      %v1411 = vpack.c.b16 %v1386, %v1385
      %v1412 = vpack.c.b16 %v1388, %v1387
      %v1413 = vpack.c.b16 %v1390, %v1389
      %v1414 = vpack.c.b16 %v1392, %v1391
      %v1415 = vpack.c.b16 %v1394, %v1393
      %v1416 = vpack.c.b16 %v1396, %v1395
      %v1417 = vpack.c.b16 %v1398, %v1397
      %v1418 = vpack.c.b16 %v1400, %v1399
      %v1419 = vpack.c.b16 %v1402, %v1401
      %v1420 = vpack.c.b16 %v1404, %v1403
      %vm1421 = vsmask.f32 256
      %v1423 = vshrl.u32 %v1405, 16
      %v1425 = vrot.slane %v1423, 7
      %v1426 = vshll.u32 %v1405, 16
      %v1428 = vor.u32 %v1425, %v1426
      %v1430 = vshrl.u32 %v1406, 16
      %v1432 = vrot.slane %v1430, 7
      %v1433 = vshll.u32 %v1406, 16
      %v1435 = vor.u32 %v1432, %v1433
      %v1436 = vsel %vm1421, %v1425, %v1435
      %v1438 = vshrl.u32 %v1407, 16
      %v1440 = vrot.slane %v1438, 7
      %v1441 = vshll.u32 %v1407, 16
      %v1443 = vor.u32 %v1440, %v1441
      %v1444 = vsel %vm1421, %v1432, %v1443
      %v1446 = vshrl.u32 %v1408, 16
      %v1448 = vrot.slane %v1446, 7
      %v1449 = vshll.u32 %v1408, 16
      %v1451 = vor.u32 %v1448, %v1449
      %v1452 = vsel %vm1421, %v1440, %v1451
      %v1454 = vshrl.u32 %v1409, 16
      %v1456 = vrot.slane %v1454, 7
      %v1457 = vshll.u32 %v1409, 16
      %v1459 = vor.u32 %v1456, %v1457
      %v1460 = vsel %vm1421, %v1448, %v1459
      %v1462 = vshrl.u32 %v1410, 16
      %v1464 = vrot.slane %v1462, 7
      %v1465 = vshll.u32 %v1410, 16
      %v1467 = vor.u32 %v1464, %v1465
      %v1468 = vsel %vm1421, %v1456, %v1467
      %v1470 = vshrl.u32 %v1411, 16
      %v1472 = vrot.slane %v1470, 7
      %v1473 = vshll.u32 %v1411, 16
      %v1475 = vor.u32 %v1472, %v1473
      %v1476 = vsel %vm1421, %v1464, %v1475
      %v1478 = vshrl.u32 %v1412, 16
      %v1480 = vrot.slane %v1478, 7
      %v1481 = vshll.u32 %v1412, 16
      %v1483 = vor.u32 %v1480, %v1481
      %v1484 = vsel %vm1421, %v1472, %v1483
      %v1486 = vshrl.u32 %v1413, 16
      %v1488 = vrot.slane %v1486, 7
      %v1489 = vshll.u32 %v1413, 16
      %v1491 = vor.u32 %v1488, %v1489
      %v1492 = vsel %vm1421, %v1480, %v1491
      %v1494 = vshrl.u32 %v1414, 16
      %v1496 = vrot.slane %v1494, 7
      %v1497 = vshll.u32 %v1414, 16
      %v1499 = vor.u32 %v1496, %v1497
      %v1500 = vsel %vm1421, %v1488, %v1499
      %v1502 = vshrl.u32 %v1415, 16
      %v1504 = vrot.slane %v1502, 7
      %v1505 = vshll.u32 %v1415, 16
      %v1507 = vor.u32 %v1504, %v1505
      %v1508 = vsel %vm1421, %v1496, %v1507
      %v1510 = vshrl.u32 %v1416, 16
      %v1512 = vrot.slane %v1510, 7
      %v1513 = vshll.u32 %v1416, 16
      %v1515 = vor.u32 %v1512, %v1513
      %v1516 = vsel %vm1421, %v1504, %v1515
      %v1518 = vshrl.u32 %v1417, 16
      %v1520 = vrot.slane %v1518, 7
      %v1521 = vshll.u32 %v1417, 16
      %v1523 = vor.u32 %v1520, %v1521
      %v1524 = vsel %vm1421, %v1512, %v1523
      %v1526 = vshrl.u32 %v1418, 16
      %v1528 = vrot.slane %v1526, 7
      %v1529 = vshll.u32 %v1418, 16
      %v1531 = vor.u32 %v1528, %v1529
      %v1532 = vsel %vm1421, %v1520, %v1531
      %v1534 = vshrl.u32 %v1419, 16
      %v1536 = vrot.slane %v1534, 7
      %v1537 = vshll.u32 %v1419, 16
      %v1539 = vor.u32 %v1536, %v1537
      %v1540 = vsel %vm1421, %v1528, %v1539
      %v1542 = vshrl.u32 %v1420, 16
      %v1544 = vrot.slane %v1542, 7
      %v1545 = vshll.u32 %v1420, 16
      %v1547 = vor.u32 %v1544, %v1545
      %v1548 = vsel %vm1421, %v1536, %v1547
      %vm1551 = vcmask 1040384
      %vm1552 = vmand %vm1551, %vm1421
      %v1553 = vsel %vm1552, 0, %v1428
      %v1554 = vsel %vm1552, %v1544, 0
      %v1587 = vunpack.c.l.b16 %v989
      %v1588 = vunpack.c.l.b16 %v990
      %v1589 = vunpack.c.l.b16 %v991
      %v1590 = vunpack.c.l.b16 %v992
      %v1591 = vunpack.c.l.b16 %v993
      %v1592 = vunpack.c.l.b16 %v994
      %v1593 = vunpack.c.l.b16 %v995
      %v1594 = vunpack.c.l.b16 %v996
      %v1595 = vunpack.c.l.b16 %v997
      %v1596 = vunpack.c.l.b16 %v998
      %v1597 = vunpack.c.l.b16 %v999
      %v1598 = vunpack.c.l.b16 %v1000
      %v1599 = vunpack.c.l.b16 %v1001
      %v1600 = vunpack.c.l.b16 %v1002
      %v1601 = vunpack.c.l.b16 %v1003
      %v1602 = vunpack.c.l.b16 %v1004
      %v1603 = vunpack.c.l.b16 %v1005
      %v1604 = vunpack.c.l.b16 %v1006
      %v1605 = vunpack.c.l.b16 %v1007
      %v1606 = vunpack.c.l.b16 %v1008
      %v1607 = vunpack.c.l.b16 %v1009
      %v1608 = vunpack.c.l.b16 %v1010
      %v1609 = vunpack.c.l.b16 %v1011
      %v1610 = vunpack.c.l.b16 %v1012
      %v1611 = vunpack.c.l.b16 %v1013
      %v1612 = vunpack.c.l.b16 %v1014
      %v1613 = vunpack.c.l.b16 %v1015
      %v1614 = vunpack.c.l.b16 %v1016
      %v1615 = vunpack.c.l.b16 %v1017
      %v1616 = vunpack.c.l.b16 %v1018
      %v1617 = vunpack.c.l.b16 %v1019
      %v1618 = vunpack.c.l.b16 %v1020
      %v1619 = vpack.c.b16 %v1588, %v1587
      %v1620 = vpack.c.b16 %v1590, %v1589
      %v1621 = vpack.c.b16 %v1592, %v1591
      %v1622 = vpack.c.b16 %v1594, %v1593
      %v1623 = vpack.c.b16 %v1596, %v1595
      %v1624 = vpack.c.b16 %v1598, %v1597
      %v1625 = vpack.c.b16 %v1600, %v1599
      %v1626 = vpack.c.b16 %v1602, %v1601
      %v1627 = vpack.c.b16 %v1604, %v1603
      %v1628 = vpack.c.b16 %v1606, %v1605
      %v1629 = vpack.c.b16 %v1608, %v1607
      %v1630 = vpack.c.b16 %v1610, %v1609
      %v1631 = vpack.c.b16 %v1612, %v1611
      %v1632 = vpack.c.b16 %v1614, %v1613
      %v1633 = vpack.c.b16 %v1616, %v1615
      %v1634 = vpack.c.b16 %v1618, %v1617
      %v1667 = vunpack.c.l.b16 %v1309
      %v1668 = vunpack.c.l.b16 %v1310
      %v1669 = vunpack.c.l.b16 %v1311
      %v1670 = vunpack.c.l.b16 %v1312
      %v1671 = vunpack.c.l.b16 %v1313
      %v1672 = vunpack.c.l.b16 %v1314
      %v1673 = vunpack.c.l.b16 %v1315
      %v1674 = vunpack.c.l.b16 %v1316
      %v1675 = vunpack.c.l.b16 %v1317
      %v1676 = vunpack.c.l.b16 %v1318
      %v1677 = vunpack.c.l.b16 %v1319
      %v1678 = vunpack.c.l.b16 %v1320
      %v1679 = vunpack.c.l.b16 %v1321
      %v1680 = vunpack.c.l.b16 %v1322
      %v1681 = vunpack.c.l.b16 %v1323
      %v1682 = vunpack.c.l.b16 %v1324
      %v1683 = vunpack.c.l.b16 %v1325
      %v1684 = vunpack.c.l.b16 %v1326
      %v1685 = vunpack.c.l.b16 %v1327
      %v1686 = vunpack.c.l.b16 %v1328
      %v1687 = vunpack.c.l.b16 %v1329
      %v1688 = vunpack.c.l.b16 %v1330
      %v1689 = vunpack.c.l.b16 %v1331
      %v1690 = vunpack.c.l.b16 %v1332
      %v1691 = vunpack.c.l.b16 %v1333
      %v1692 = vunpack.c.l.b16 %v1334
      %v1693 = vunpack.c.l.b16 %v1335
      %v1694 = vunpack.c.l.b16 %v1336
      %v1695 = vunpack.c.l.b16 %v1337
      %v1696 = vunpack.c.l.b16 %v1338
      %v1697 = vunpack.c.l.b16 %v1339
      %v1698 = vunpack.c.l.b16 %v1340
      %v1699 = vpack.c.b16 %v1668, %v1667
      %v1700 = vpack.c.b16 %v1670, %v1669
      %v1701 = vpack.c.b16 %v1672, %v1671
      %v1702 = vpack.c.b16 %v1674, %v1673
      %v1703 = vpack.c.b16 %v1676, %v1675
      %v1704 = vpack.c.b16 %v1678, %v1677
      %v1705 = vpack.c.b16 %v1680, %v1679
      %v1706 = vpack.c.b16 %v1682, %v1681
      %v1707 = vpack.c.b16 %v1684, %v1683
      %v1708 = vpack.c.b16 %v1686, %v1685
      %v1709 = vpack.c.b16 %v1688, %v1687
      %v1710 = vpack.c.b16 %v1690, %v1689
      %v1711 = vpack.c.b16 %v1692, %v1691
      %v1712 = vpack.c.b16 %v1694, %v1693
      %v1713 = vpack.c.b16 %v1696, %v1695
      %v1714 = vpack.c.b16 %v1698, %v1697
      %vm1715 = vsmask.f32 7424
      %v1717 = vshll.u32 %v1699, 16
      %v1719 = vrot.slane %v1717, 1
      %v1720 = vshrl.u32 %v1699, 16
      %v1722 = vor.u32 %v1720, %v1719
      %v1724 = vshll.u32 %v1700, 16
      %v1726 = vrot.slane %v1724, 1
      %v1727 = vsel %vm1715, %v1722, %v1726
      %v1728 = vshrl.u32 %v1700, 16
      %v1730 = vor.u32 %v1728, %v1726
      %v1732 = vshll.u32 %v1701, 16
      %v1734 = vrot.slane %v1732, 1
      %v1735 = vsel %vm1715, %v1730, %v1734
      %v1736 = vshrl.u32 %v1701, 16
      %v1738 = vor.u32 %v1736, %v1734
      %v1740 = vshll.u32 %v1702, 16
      %v1742 = vrot.slane %v1740, 1
      %v1743 = vsel %vm1715, %v1738, %v1742
      %v1744 = vshrl.u32 %v1702, 16
      %v1746 = vor.u32 %v1744, %v1742
      %v1748 = vshll.u32 %v1703, 16
      %v1750 = vrot.slane %v1748, 1
      %v1751 = vsel %vm1715, %v1746, %v1750
      %v1752 = vshrl.u32 %v1703, 16
      %v1754 = vor.u32 %v1752, %v1750
      %v1756 = vshll.u32 %v1704, 16
      %v1758 = vrot.slane %v1756, 1
      %v1759 = vsel %vm1715, %v1754, %v1758
      %v1760 = vshrl.u32 %v1704, 16
      %v1762 = vor.u32 %v1760, %v1758
      %v1764 = vshll.u32 %v1705, 16
      %v1766 = vrot.slane %v1764, 1
      %v1767 = vsel %vm1715, %v1762, %v1766
      %v1768 = vshrl.u32 %v1705, 16
      %v1770 = vor.u32 %v1768, %v1766
      %v1772 = vshll.u32 %v1706, 16
      %v1774 = vrot.slane %v1772, 1
      %v1775 = vsel %vm1715, %v1770, %v1774
      %v1776 = vshrl.u32 %v1706, 16
      %v1778 = vor.u32 %v1776, %v1774
      %v1780 = vshll.u32 %v1707, 16
      %v1782 = vrot.slane %v1780, 1
      %v1783 = vsel %vm1715, %v1778, %v1782
      %v1784 = vshrl.u32 %v1707, 16
      %v1786 = vor.u32 %v1784, %v1782
      %v1788 = vshll.u32 %v1708, 16
      %v1790 = vrot.slane %v1788, 1
      %v1791 = vsel %vm1715, %v1786, %v1790
      %v1792 = vshrl.u32 %v1708, 16
      %v1794 = vor.u32 %v1792, %v1790
      %v1796 = vshll.u32 %v1709, 16
      %v1798 = vrot.slane %v1796, 1
      %v1799 = vsel %vm1715, %v1794, %v1798
      %v1800 = vshrl.u32 %v1709, 16
      %v1802 = vor.u32 %v1800, %v1798
      %v1804 = vshll.u32 %v1710, 16
      %v1806 = vrot.slane %v1804, 1
      %v1807 = vsel %vm1715, %v1802, %v1806
      %v1808 = vshrl.u32 %v1710, 16
      %v1810 = vor.u32 %v1808, %v1806
      %v1812 = vshll.u32 %v1711, 16
      %v1814 = vrot.slane %v1812, 1
      %v1815 = vsel %vm1715, %v1810, %v1814
      %v1816 = vshrl.u32 %v1711, 16
      %v1818 = vor.u32 %v1816, %v1814
      %v1820 = vshll.u32 %v1712, 16
      %v1822 = vrot.slane %v1820, 1
      %v1823 = vsel %vm1715, %v1818, %v1822
      %v1824 = vshrl.u32 %v1712, 16
      %v1826 = vor.u32 %v1824, %v1822
      %v1828 = vshll.u32 %v1713, 16
      %v1830 = vrot.slane %v1828, 1
      %v1831 = vsel %vm1715, %v1826, %v1830
      %v1832 = vshrl.u32 %v1713, 16
      %v1834 = vor.u32 %v1832, %v1830
      %v1836 = vshll.u32 %v1714, 16
      %v1838 = vrot.slane %v1836, 1
      %v1839 = vsel %vm1715, %v1834, %v1838
      %v1840 = vshrl.u32 %v1714, 16
      %v1842 = vor.u32 %v1840, %v1838
      %vm1845 = vcmask 1047552
      %vm1846 = vmand %vm1845, %vm1715
      %v1847 = vsel %vm1846, 0, %v1719
      %v1848 = vsel %vm1846, %v1842, 0
      %1850 = vrot.lane.b32.xlu0 0, 4
      %v1851 = vpop.permute.xlu0 %1850
      %1852 = vrot.lane.b32.xlu0 %v1619, 4
      %v1853 = vpop.permute.xlu0 %1852
      %1854 = vrot.lane.b32.xlu0 %v1620, 4
      %v1855 = vpop.permute.xlu0 %1854
      %1856 = vrot.lane.b32.xlu0 %v1621, 4
      %v1857 = vpop.permute.xlu0 %1856
      %1858 = vrot.lane.b32.xlu0 %v1622, 4
      %v1859 = vpop.permute.xlu0 %1858
      %1860 = vrot.lane.b32.xlu0 %v1623, 4
      %v1861 = vpop.permute.xlu0 %1860
      %1862 = vrot.lane.b32.xlu0 %v1624, 4
      %v1863 = vpop.permute.xlu0 %1862
      %1864 = vrot.lane.b32.xlu0 %v1625, 4
      %v1865 = vpop.permute.xlu0 %1864
      %1866 = vrot.lane.b32.xlu0 %v1626, 4
      %v1867 = vpop.permute.xlu0 %1866
      %1868 = vrot.lane.b32.xlu0 %v1627, 4
      %v1869 = vpop.permute.xlu0 %1868
      %1870 = vrot.lane.b32.xlu0 %v1628, 4
      %v1871 = vpop.permute.xlu0 %1870
      %1872 = vrot.lane.b32.xlu0 %v1629, 4
      %v1873 = vpop.permute.xlu0 %1872
      %1874 = vrot.lane.b32.xlu0 %v1630, 4
      %v1875 = vpop.permute.xlu0 %1874
      %1876 = vrot.lane.b32.xlu0 %v1631, 4
      %v1877 = vpop.permute.xlu0 %1876
      %1878 = vrot.lane.b32.xlu0 %v1632, 4
      %v1879 = vpop.permute.xlu0 %1878
      %1880 = vrot.lane.b32.xlu0 %v1633, 4
      %v1881 = vpop.permute.xlu0 %1880
      %1882 = vrot.lane.b32.xlu0 %v1634, 4
      %v1883 = vpop.permute.xlu0 %1882
      %1886 = vrot.lane.b32.xlu0 %v1847, 8
      %v1887 = vpop.permute.xlu0 %1886
      %1888 = vrot.lane.b32.xlu0 %v1727, 8
      %v1889 = vpop.permute.xlu0 %1888
      %1890 = vrot.lane.b32.xlu0 %v1735, 8
      %v1891 = vpop.permute.xlu0 %1890
      %1892 = vrot.lane.b32.xlu0 %v1743, 8
      %v1893 = vpop.permute.xlu0 %1892
      %1894 = vrot.lane.b32.xlu0 %v1751, 8
      %v1895 = vpop.permute.xlu0 %1894
      %1896 = vrot.lane.b32.xlu0 %v1759, 8
      %v1897 = vpop.permute.xlu0 %1896
      %1898 = vrot.lane.b32.xlu0 %v1767, 8
      %v1899 = vpop.permute.xlu0 %1898
      %1900 = vrot.lane.b32.xlu0 %v1775, 8
      %v1901 = vpop.permute.xlu0 %1900
      %1902 = vrot.lane.b32.xlu0 %v1783, 8
      %v1903 = vpop.permute.xlu0 %1902
      %1904 = vrot.lane.b32.xlu0 %v1791, 8
      %v1905 = vpop.permute.xlu0 %1904
      %1906 = vrot.lane.b32.xlu0 %v1799, 8
      %v1907 = vpop.permute.xlu0 %1906
      %1908 = vrot.lane.b32.xlu0 %v1807, 8
      %v1909 = vpop.permute.xlu0 %1908
      %1910 = vrot.lane.b32.xlu0 %v1815, 8
      %v1911 = vpop.permute.xlu0 %1910
      %1912 = vrot.lane.b32.xlu0 %v1823, 8
      %v1913 = vpop.permute.xlu0 %1912
      %1914 = vrot.lane.b32.xlu0 %v1831, 8
      %v1915 = vpop.permute.xlu0 %1914
      %1916 = vrot.lane.b32.xlu0 %v1839, 8
      %v1917 = vpop.permute.xlu0 %1916
      %1918 = vrot.lane.b32.xlu0 %v1848, 8
      %v1919 = vpop.permute.xlu0 %1918
      %1920 = vrot.lane.b32.xlu0 0, 8
      %v1921 = vpop.permute.xlu0 %1920
      %vm1922 = vcmask 31744
      %v1925 = vsel %vm1922, 0, %v1851
      %v1928 = vsel %vm1922, %v1553, %v1853
      %v1931 = vsel %vm1922, %v1436, %v1855
      %v1934 = vsel %vm1922, %v1444, %v1857
      %v1937 = vsel %vm1922, %v1452, %v1859
      %v1940 = vsel %vm1922, %v1460, %v1861
      %v1943 = vsel %vm1922, %v1468, %v1863
      %v1946 = vsel %vm1922, %v1476, %v1865
      %v1949 = vsel %vm1922, %v1484, %v1867
      %v1952 = vsel %vm1922, %v1492, %v1869
      %v1955 = vsel %vm1922, %v1500, %v1871
      %v1958 = vsel %vm1922, %v1508, %v1873
      %v1961 = vsel %vm1922, %v1516, %v1875
      %v1964 = vsel %vm1922, %v1524, %v1877
      %v1967 = vsel %vm1922, %v1532, %v1879
      %v1970 = vsel %vm1922, %v1540, %v1881
      %v1973 = vsel %vm1922, %v1548, %v1883
      %v1975 = vsel %vm1922, %v1554, %v1851
      %vm1976 = vcmask 64512
      %v1978 = vsel %vm1976, %v1925, %v1887
      %v1980 = vsel %vm1976, %v1928, %v1889
      %v1982 = vsel %vm1976, %v1931, %v1891
      %v1984 = vsel %vm1976, %v1934, %v1893
      %v1986 = vsel %vm1976, %v1937, %v1895
      %v1988 = vsel %vm1976, %v1940, %v1897
      %v1990 = vsel %vm1976, %v1943, %v1899
      %v1992 = vsel %vm1976, %v1946, %v1901
      %v1994 = vsel %vm1976, %v1949, %v1903
      %v1996 = vsel %vm1976, %v1952, %v1905
      %v1998 = vsel %vm1976, %v1955, %v1907
      %v2000 = vsel %vm1976, %v1958, %v1909
      %v2002 = vsel %vm1976, %v1961, %v1911
      %v2004 = vsel %vm1976, %v1964, %v1913
      %v2006 = vsel %vm1976, %v1967, %v1915
      %v2008 = vsel %vm1976, %v1970, %v1917
      %v2010 = vsel %vm1976, %v1973, %v1919
      %v2012 = vsel %vm1976, %v1975, %v1921
      %v2013 = vld [vmem:[%s2] sm:$0xf]
      %v2014 = vld [vmem:[%s2 + $0x4] sm:$0x3]
      %v2017 = vunpack.c.l.b16 %v2013
      %v2018 = vunpack.c.l.b16 %v2014
      %v2019 = vpack.c.b16 %v2018, %v2017
      %vm2020 = vcmask 97280
      %v2021 = vsel %vm2020, %v1978, 0
      %v2023 = vsel %vm2020, %v1980, 0
      %v2025 = vsel %vm2020, %v1982, 0
      %v2027 = vsel %vm2020, %v1984, 0
      %v2029 = vsel %vm2020, %v1986, 0
      %v2031 = vsel %vm2020, %v1988, 0
      %v2033 = vsel %vm2020, %v1990, 0
      %v2035 = vsel %vm2020, %v1992, 0
      %v2037 = vsel %vm2020, %v1994, 0
      %v2039 = vsel %vm2020, %v1996, 0
      %v2041 = vsel %vm2020, %v1998, 0
      %v2043 = vsel %vm2020, %v2000, 0
      %v2045 = vsel %vm2020, %v2002, 0
      %v2047 = vsel %vm2020, %v2004, 0
      %v2049 = vsel %vm2020, %v2006, 0
      %v2051 = vsel %vm2020, %v2008, 0
      %v2053 = vsel %vm2020, %v2010, 0
      %v2055 = vsel %vm2020, %v2012, 0
      %vm2057 = vcmask 1045504
      %v2059 = vsel %vm2057, %v2019, 0
      %2061 = vmatpush.bf16.msra.mxu0 0
      %2062 = vmatpush.bf16.msra.mxu0 0
      %2063 = vmatpush.bf16.msra.mxu0 0
      %2064 = vmatpush.bf16.msra.mxu0 0
      %2065 = vmatpush.bf16.msra.mxu0 0
      %2066 = vmatpush.bf16.msra.mxu0 0
      %2067 = vmatpush.bf16.msra.mxu0 0
      %2068 = vmatpush.bf16.msra.mxu0 %v2059
      %2069 = vmatmul.bf16.gmra.mxu0 %v2021
      %v2070 = vpop.f32.mrf.mxu0
      %v2071 = vadd.f32 0.0, %v2070
      %v2072 = vpop.f32.mrf.mxu0
      %v2073 = vadd.f32 0.0, %v2072
      %2074 = vmatmul.bf16.gmra.mxu0 %v2023
      %v2075 = vpop.f32.mrf.mxu0
      %v2076 = vadd.f32 0.0, %v2075
      %v2077 = vpop.f32.mrf.mxu0
      %v2078 = vadd.f32 0.0, %v2077
      %2079 = vmatmul.bf16.gmra.mxu0 %v2025
      %v2080 = vpop.f32.mrf.mxu0
      %v2081 = vadd.f32 0.0, %v2080
      %v2082 = vpop.f32.mrf.mxu0
      %v2083 = vadd.f32 0.0, %v2082
      %2084 = vmatmul.bf16.gmra.mxu0 %v2027
      %v2085 = vpop.f32.mrf.mxu0
      %v2086 = vadd.f32 0.0, %v2085
      %v2087 = vpop.f32.mrf.mxu0
      %v2088 = vadd.f32 0.0, %v2087
      %2089 = vmatmul.bf16.gmra.mxu0 %v2029
      %v2090 = vpop.f32.mrf.mxu0
      %v2091 = vadd.f32 0.0, %v2090
      %v2092 = vpop.f32.mrf.mxu0
      %v2093 = vadd.f32 0.0, %v2092
      %2094 = vmatmul.bf16.gmra.mxu0 %v2031
      %v2095 = vpop.f32.mrf.mxu0
      %v2096 = vadd.f32 0.0, %v2095
      %v2097 = vpop.f32.mrf.mxu0
      %v2098 = vadd.f32 0.0, %v2097
      %2099 = vmatmul.bf16.gmra.mxu0 %v2033
      %v2100 = vpop.f32.mrf.mxu0
      %v2101 = vadd.f32 0.0, %v2100
      %v2102 = vpop.f32.mrf.mxu0
      %v2103 = vadd.f32 0.0, %v2102
      %2104 = vmatmul.bf16.gmra.mxu0 %v2035
      %v2105 = vpop.f32.mrf.mxu0
      %v2106 = vadd.f32 0.0, %v2105
      %v2107 = vpop.f32.mrf.mxu0
      %v2108 = vadd.f32 0.0, %v2107
      %2109 = vmatmul.bf16.gmra.mxu0 %v2037
      %v2110 = vpop.f32.mrf.mxu0
      %v2111 = vadd.f32 0.0, %v2110
      %v2112 = vpop.f32.mrf.mxu0
      %v2113 = vadd.f32 0.0, %v2112
      %2114 = vmatmul.bf16.gmra.mxu0 %v2039
      %v2115 = vpop.f32.mrf.mxu0
      %v2116 = vadd.f32 0.0, %v2115
      %v2117 = vpop.f32.mrf.mxu0
      %v2118 = vadd.f32 0.0, %v2117
      %2119 = vmatmul.bf16.gmra.mxu0 %v2041
      %v2120 = vpop.f32.mrf.mxu0
      %v2121 = vadd.f32 0.0, %v2120
      %v2122 = vpop.f32.mrf.mxu0
      %v2123 = vadd.f32 0.0, %v2122
      %2124 = vmatmul.bf16.gmra.mxu0 %v2043
      %v2125 = vpop.f32.mrf.mxu0
      %v2126 = vadd.f32 0.0, %v2125
      %v2127 = vpop.f32.mrf.mxu0
      %v2128 = vadd.f32 0.0, %v2127
      %2129 = vmatmul.bf16.gmra.mxu0 %v2045
      %v2130 = vpop.f32.mrf.mxu0
      %v2131 = vadd.f32 0.0, %v2130
      %v2132 = vpop.f32.mrf.mxu0
      %v2133 = vadd.f32 0.0, %v2132
      %2134 = vmatmul.bf16.gmra.mxu0 %v2047
      %v2135 = vpop.f32.mrf.mxu0
      %v2136 = vadd.f32 0.0, %v2135
      %v2137 = vpop.f32.mrf.mxu0
      %v2138 = vadd.f32 0.0, %v2137
      %2139 = vmatmul.bf16.gmra.mxu0 %v2049
      %v2140 = vpop.f32.mrf.mxu0
      %v2141 = vadd.f32 0.0, %v2140
      %v2142 = vpop.f32.mrf.mxu0
      %v2143 = vadd.f32 0.0, %v2142
      %2144 = vmatmul.bf16.gmra.mxu0 %v2051
      %v2145 = vpop.f32.mrf.mxu0
      %v2146 = vadd.f32 0.0, %v2145
      %v2147 = vpop.f32.mrf.mxu0
      %v2148 = vadd.f32 0.0, %v2147
      %2149 = vmatmul.bf16.gmra.mxu0 %v2053
      %v2150 = vpop.f32.mrf.mxu0
      %v2151 = vadd.f32 0.0, %v2150
      %v2152 = vpop.f32.mrf.mxu0
      %v2153 = vadd.f32 0.0, %v2152
      %2154 = vmatmul.bf16.gmra.mxu0 %v2055
      %v2155 = vpop.f32.mrf.mxu0
      %v2156 = vadd.f32 0.0, %v2155
      %v2157 = vpop.f32.mrf.mxu0
      %v2158 = vadd.f32 0.0, %v2157
      %2159 = vdwg.mxu0
      %2192 = vrot.lane.b32.xlu0 %v2076, 124
      %v2193 = vpop.permute.xlu0 %2192
      %2194 = vrot.lane.b32.xlu0 %v2078, 124
      %v2195 = vpop.permute.xlu0 %2194
      %2196 = vrot.lane.b32.xlu0 %v2081, 124
      %v2197 = vpop.permute.xlu0 %2196
      %2198 = vrot.lane.b32.xlu0 %v2083, 124
      %v2199 = vpop.permute.xlu0 %2198
      %2200 = vrot.lane.b32.xlu0 %v2086, 124
      %v2201 = vpop.permute.xlu0 %2200
      %2202 = vrot.lane.b32.xlu0 %v2088, 124
      %v2203 = vpop.permute.xlu0 %2202
      %2204 = vrot.lane.b32.xlu0 %v2091, 124
      %v2205 = vpop.permute.xlu0 %2204
      %2206 = vrot.lane.b32.xlu0 %v2093, 124
      %v2207 = vpop.permute.xlu0 %2206
      %2208 = vrot.lane.b32.xlu0 %v2096, 124
      %v2209 = vpop.permute.xlu0 %2208
      %2210 = vrot.lane.b32.xlu0 %v2098, 124
      %v2211 = vpop.permute.xlu0 %2210
      %2212 = vrot.lane.b32.xlu0 %v2101, 124
      %v2213 = vpop.permute.xlu0 %2212
      %2214 = vrot.lane.b32.xlu0 %v2103, 124
      %v2215 = vpop.permute.xlu0 %2214
      %2216 = vrot.lane.b32.xlu0 %v2106, 124
      %v2217 = vpop.permute.xlu0 %2216
      %2218 = vrot.lane.b32.xlu0 %v2108, 124
      %v2219 = vpop.permute.xlu0 %2218
      %2220 = vrot.lane.b32.xlu0 %v2111, 124
      %v2221 = vpop.permute.xlu0 %2220
      %2222 = vrot.lane.b32.xlu0 %v2113, 124
      %v2223 = vpop.permute.xlu0 %2222
      %2224 = vrot.lane.b32.xlu0 %v2116, 124
      %v2225 = vpop.permute.xlu0 %2224
      %2226 = vrot.lane.b32.xlu0 %v2118, 124
      %v2227 = vpop.permute.xlu0 %2226
      %2228 = vrot.lane.b32.xlu0 %v2121, 124
      %v2229 = vpop.permute.xlu0 %2228
      %2230 = vrot.lane.b32.xlu0 %v2123, 124
      %v2231 = vpop.permute.xlu0 %2230
      %2232 = vrot.lane.b32.xlu0 %v2126, 124
      %v2233 = vpop.permute.xlu0 %2232
      %2234 = vrot.lane.b32.xlu0 %v2128, 124
      %v2235 = vpop.permute.xlu0 %2234
      %2236 = vrot.lane.b32.xlu0 %v2131, 124
      %v2237 = vpop.permute.xlu0 %2236
      %2238 = vrot.lane.b32.xlu0 %v2133, 124
      %v2239 = vpop.permute.xlu0 %2238
      %2240 = vrot.lane.b32.xlu0 %v2136, 124
      %v2241 = vpop.permute.xlu0 %2240
      %2242 = vrot.lane.b32.xlu0 %v2138, 124
      %v2243 = vpop.permute.xlu0 %2242
      %2244 = vrot.lane.b32.xlu0 %v2141, 124
      %v2245 = vpop.permute.xlu0 %2244
      %2246 = vrot.lane.b32.xlu0 %v2143, 124
      %v2247 = vpop.permute.xlu0 %2246
      %2248 = vrot.lane.b32.xlu0 %v2146, 124
      %v2249 = vpop.permute.xlu0 %2248
      %2250 = vrot.lane.b32.xlu0 %v2148, 124
      %v2251 = vpop.permute.xlu0 %2250
      %2252 = vrot.lane.b32.xlu0 %v2151, 124
      %v2253 = vpop.permute.xlu0 %2252
      %2254 = vrot.lane.b32.xlu0 %v2153, 124
      %v2255 = vpop.permute.xlu0 %2254
      %v2288 = vadd.f32 %v2071, %v2193
      %v2289 = vadd.f32 %v2073, %v2195
      %v2290 = vadd.f32 %v2076, %v2197
      %v2291 = vadd.f32 %v2078, %v2199
      %v2292 = vadd.f32 %v2081, %v2201
      %v2293 = vadd.f32 %v2083, %v2203
      %v2294 = vadd.f32 %v2086, %v2205
      %v2295 = vadd.f32 %v2088, %v2207
      %v2296 = vadd.f32 %v2091, %v2209
      %v2297 = vadd.f32 %v2093, %v2211
      %v2298 = vadd.f32 %v2096, %v2213
      %v2299 = vadd.f32 %v2098, %v2215
      %v2300 = vadd.f32 %v2101, %v2217
      %v2301 = vadd.f32 %v2103, %v2219
      %v2302 = vadd.f32 %v2106, %v2221
      %v2303 = vadd.f32 %v2108, %v2223
      %v2304 = vadd.f32 %v2111, %v2225
      %v2305 = vadd.f32 %v2113, %v2227
      %v2306 = vadd.f32 %v2116, %v2229
      %v2307 = vadd.f32 %v2118, %v2231
      %v2308 = vadd.f32 %v2121, %v2233
      %v2309 = vadd.f32 %v2123, %v2235
      %v2310 = vadd.f32 %v2126, %v2237
      %v2311 = vadd.f32 %v2128, %v2239
      %v2312 = vadd.f32 %v2131, %v2241
      %v2313 = vadd.f32 %v2133, %v2243
      %v2314 = vadd.f32 %v2136, %v2245
      %v2315 = vadd.f32 %v2138, %v2247
      %v2316 = vadd.f32 %v2141, %v2249
      %v2317 = vadd.f32 %v2143, %v2251
      %v2318 = vadd.f32 %v2146, %v2253
      %v2319 = vadd.f32 %v2148, %v2255
      %2322 = vrot.lane.b32.xlu0 %v2081, 120
      %v2323 = vpop.permute.xlu0 %2322
      %2324 = vrot.lane.b32.xlu0 %v2083, 120
      %v2325 = vpop.permute.xlu0 %2324
      %2326 = vrot.lane.b32.xlu0 %v2086, 120
      %v2327 = vpop.permute.xlu0 %2326
      %2328 = vrot.lane.b32.xlu0 %v2088, 120
      %v2329 = vpop.permute.xlu0 %2328
      %2330 = vrot.lane.b32.xlu0 %v2091, 120
      %v2331 = vpop.permute.xlu0 %2330
      %2332 = vrot.lane.b32.xlu0 %v2093, 120
      %v2333 = vpop.permute.xlu0 %2332
      %2334 = vrot.lane.b32.xlu0 %v2096, 120
      %v2335 = vpop.permute.xlu0 %2334
      %2336 = vrot.lane.b32.xlu0 %v2098, 120
      %v2337 = vpop.permute.xlu0 %2336
      %2338 = vrot.lane.b32.xlu0 %v2101, 120
      %v2339 = vpop.permute.xlu0 %2338
      %2340 = vrot.lane.b32.xlu0 %v2103, 120
      %v2341 = vpop.permute.xlu0 %2340
      %2342 = vrot.lane.b32.xlu0 %v2106, 120
      %v2343 = vpop.permute.xlu0 %2342
      %2344 = vrot.lane.b32.xlu0 %v2108, 120
      %v2345 = vpop.permute.xlu0 %2344
      %2346 = vrot.lane.b32.xlu0 %v2111, 120
      %v2347 = vpop.permute.xlu0 %2346
      %2348 = vrot.lane.b32.xlu0 %v2113, 120
      %v2349 = vpop.permute.xlu0 %2348
      %2350 = vrot.lane.b32.xlu0 %v2116, 120
      %v2351 = vpop.permute.xlu0 %2350
      %2352 = vrot.lane.b32.xlu0 %v2118, 120
      %v2353 = vpop.permute.xlu0 %2352
      %2354 = vrot.lane.b32.xlu0 %v2121, 120
      %v2355 = vpop.permute.xlu0 %2354
      %2356 = vrot.lane.b32.xlu0 %v2123, 120
      %v2357 = vpop.permute.xlu0 %2356
      %2358 = vrot.lane.b32.xlu0 %v2126, 120
      %v2359 = vpop.permute.xlu0 %2358
      %2360 = vrot.lane.b32.xlu0 %v2128, 120
      %v2361 = vpop.permute.xlu0 %2360
      %2362 = vrot.lane.b32.xlu0 %v2131, 120
      %v2363 = vpop.permute.xlu0 %2362
      %2364 = vrot.lane.b32.xlu0 %v2133, 120
      %v2365 = vpop.permute.xlu0 %2364
      %2366 = vrot.lane.b32.xlu0 %v2136, 120
      %v2367 = vpop.permute.xlu0 %2366
      %2368 = vrot.lane.b32.xlu0 %v2138, 120
      %v2369 = vpop.permute.xlu0 %2368
      %2370 = vrot.lane.b32.xlu0 %v2141, 120
      %v2371 = vpop.permute.xlu0 %2370
      %2372 = vrot.lane.b32.xlu0 %v2143, 120
      %v2373 = vpop.permute.xlu0 %2372
      %2374 = vrot.lane.b32.xlu0 %v2146, 120
      %v2375 = vpop.permute.xlu0 %2374
      %2376 = vrot.lane.b32.xlu0 %v2148, 120
      %v2377 = vpop.permute.xlu0 %2376
      %2378 = vrot.lane.b32.xlu0 %v2151, 120
      %v2379 = vpop.permute.xlu0 %2378
      %2380 = vrot.lane.b32.xlu0 %v2153, 120
      %v2381 = vpop.permute.xlu0 %2380
      %2382 = vrot.lane.b32.xlu0 %v2156, 120
      %v2383 = vpop.permute.xlu0 %2382
      %2384 = vrot.lane.b32.xlu0 %v2158, 120
      %v2385 = vpop.permute.xlu0 %2384
      %v2418 = vadd.f32 %v2288, %v2323
      %v2419 = vadd.f32 %v2289, %v2325
      %v2420 = vadd.f32 %v2290, %v2327
      %v2421 = vadd.f32 %v2291, %v2329
      %v2422 = vadd.f32 %v2292, %v2331
      %v2423 = vadd.f32 %v2293, %v2333
      %v2424 = vadd.f32 %v2294, %v2335
      %v2425 = vadd.f32 %v2295, %v2337
      %v2426 = vadd.f32 %v2296, %v2339
      %v2427 = vadd.f32 %v2297, %v2341
      %v2428 = vadd.f32 %v2298, %v2343
      %v2429 = vadd.f32 %v2299, %v2345
      %v2430 = vadd.f32 %v2300, %v2347
      %v2431 = vadd.f32 %v2301, %v2349
      %v2432 = vadd.f32 %v2302, %v2351
      %v2433 = vadd.f32 %v2303, %v2353
      %v2434 = vadd.f32 %v2304, %v2355
      %v2435 = vadd.f32 %v2305, %v2357
      %v2436 = vadd.f32 %v2306, %v2359
      %v2437 = vadd.f32 %v2307, %v2361
      %v2438 = vadd.f32 %v2308, %v2363
      %v2439 = vadd.f32 %v2309, %v2365
      %v2440 = vadd.f32 %v2310, %v2367
      %v2441 = vadd.f32 %v2311, %v2369
      %v2442 = vadd.f32 %v2312, %v2371
      %v2443 = vadd.f32 %v2313, %v2373
      %v2444 = vadd.f32 %v2314, %v2375
      %v2445 = vadd.f32 %v2315, %v2377
      %v2446 = vadd.f32 %v2316, %v2379
      %v2447 = vadd.f32 %v2317, %v2381
      %v2448 = vadd.f32 %v2318, %v2383
      %v2449 = vadd.f32 %v2319, %v2385
      %v2450 = vld [vmem:[%s6 + $0x1] sm:$0x1]
      %v2451 = vperm.slane %v2450, 0
      %v2452 = vadd.f32 %v2418, %v2451
      %v2453 = vadd.f32 %v2419, %v2451
      %v2454 = vadd.f32 %v2420, %v2451
      %v2455 = vadd.f32 %v2421, %v2451
      %v2456 = vadd.f32 %v2422, %v2451
      %v2457 = vadd.f32 %v2423, %v2451
      %v2458 = vadd.f32 %v2424, %v2451
      %v2459 = vadd.f32 %v2425, %v2451
      %v2460 = vadd.f32 %v2426, %v2451
      %v2461 = vadd.f32 %v2427, %v2451
      %v2462 = vadd.f32 %v2428, %v2451
      %v2463 = vadd.f32 %v2429, %v2451
      %v2464 = vadd.f32 %v2430, %v2451
      %v2465 = vadd.f32 %v2431, %v2451
      %v2466 = vadd.f32 %v2432, %v2451
      %v2467 = vadd.f32 %v2433, %v2451
      %v2468 = vadd.f32 %v2434, %v2451
      %v2469 = vadd.f32 %v2435, %v2451
      %v2470 = vadd.f32 %v2436, %v2451
      %v2471 = vadd.f32 %v2437, %v2451
      %v2472 = vadd.f32 %v2438, %v2451
      %v2473 = vadd.f32 %v2439, %v2451
      %v2474 = vadd.f32 %v2440, %v2451
      %v2475 = vadd.f32 %v2441, %v2451
      %v2476 = vadd.f32 %v2442, %v2451
      %v2477 = vadd.f32 %v2443, %v2451
      %v2478 = vadd.f32 %v2444, %v2451
      %v2479 = vadd.f32 %v2445, %v2451
      %v2480 = vadd.f32 %v2446, %v2451
      %v2481 = vadd.f32 %v2447, %v2451
      %v2482 = vadd.f32 %v2448, %v2451
      %v2483 = vadd.f32 %v2449, %v2451
      %v2484 = vmax.f32 %v2452, 0.0
      %v2485 = vmax.f32 %v2453, 0.0
      %v2486 = vmax.f32 %v2454, 0.0
      %v2487 = vmax.f32 %v2455, 0.0
      %v2488 = vmax.f32 %v2456, 0.0
      %v2489 = vmax.f32 %v2457, 0.0
      %v2490 = vmax.f32 %v2458, 0.0
      %v2491 = vmax.f32 %v2459, 0.0
      %v2492 = vmax.f32 %v2460, 0.0
      %v2493 = vmax.f32 %v2461, 0.0
      %v2494 = vmax.f32 %v2462, 0.0
      %v2495 = vmax.f32 %v2463, 0.0
      %v2496 = vmax.f32 %v2464, 0.0
      %v2497 = vmax.f32 %v2465, 0.0
      %v2498 = vmax.f32 %v2466, 0.0
      %v2499 = vmax.f32 %v2467, 0.0
      %v2500 = vmax.f32 %v2468, 0.0
      %v2501 = vmax.f32 %v2469, 0.0
      %v2502 = vmax.f32 %v2470, 0.0
      %v2503 = vmax.f32 %v2471, 0.0
      %v2504 = vmax.f32 %v2472, 0.0
      %v2505 = vmax.f32 %v2473, 0.0
      %v2506 = vmax.f32 %v2474, 0.0
      %v2507 = vmax.f32 %v2475, 0.0
      %v2508 = vmax.f32 %v2476, 0.0
      %v2509 = vmax.f32 %v2477, 0.0
      %v2510 = vmax.f32 %v2478, 0.0
      %v2511 = vmax.f32 %v2479, 0.0
      %v2512 = vmax.f32 %v2480, 0.0
      %v2513 = vmax.f32 %v2481, 0.0
      %v2514 = vmax.f32 %v2482, 0.0
      %v2515 = vmax.f32 %v2483, 0.0
      %v2516 = vsel %vm1922, %v2484, 0.0
      %v2517 = vsel %vm1922, %v2485, 0.0
      %v2518 = vadd.f32 %v2516, %v2517
      %v2519 = vsel %vm1922, %v2486, 0.0
      %v2520 = vadd.f32 %v2518, %v2519
      %v2521 = vsel %vm1922, %v2487, 0.0
      %v2522 = vadd.f32 %v2520, %v2521
      %v2523 = vsel %vm1922, %v2488, 0.0
      %v2524 = vadd.f32 %v2522, %v2523
      %v2525 = vsel %vm1922, %v2489, 0.0
      %v2526 = vadd.f32 %v2524, %v2525
      %v2527 = vsel %vm1922, %v2490, 0.0
      %v2528 = vadd.f32 %v2526, %v2527
      %v2529 = vsel %vm1922, %v2491, 0.0
      %v2530 = vadd.f32 %v2528, %v2529
      %v2531 = vsel %vm1922, %v2492, 0.0
      %v2532 = vadd.f32 %v2530, %v2531
      %v2533 = vsel %vm1922, %v2493, 0.0
      %v2534 = vadd.f32 %v2532, %v2533
      %v2535 = vsel %vm1922, %v2494, 0.0
      %v2536 = vadd.f32 %v2534, %v2535
      %v2537 = vsel %vm1922, %v2495, 0.0
      %v2538 = vadd.f32 %v2536, %v2537
      %v2539 = vsel %vm1922, %v2496, 0.0
      %v2540 = vadd.f32 %v2538, %v2539
      %v2541 = vsel %vm1922, %v2497, 0.0
      %v2542 = vadd.f32 %v2540, %v2541
      %v2543 = vsel %vm1922, %v2498, 0.0
      %v2544 = vadd.f32 %v2542, %v2543
      %v2545 = vsel %vm1922, %v2499, 0.0
      %v2546 = vadd.f32 %v2544, %v2545
      %v2547 = vsel %vm1922, %v2500, 0.0
      %v2548 = vadd.f32 %v2546, %v2547
      %v2549 = vsel %vm1922, %v2501, 0.0
      %v2550 = vadd.f32 %v2548, %v2549
      %v2551 = vsel %vm1922, %v2502, 0.0
      %v2552 = vadd.f32 %v2550, %v2551
      %v2553 = vsel %vm1922, %v2503, 0.0
      %v2554 = vadd.f32 %v2552, %v2553
      %v2555 = vsel %vm1922, %v2504, 0.0
      %v2556 = vadd.f32 %v2554, %v2555
      %v2557 = vsel %vm1922, %v2505, 0.0
      %v2558 = vadd.f32 %v2556, %v2557
      %v2559 = vsel %vm1922, %v2506, 0.0
      %v2560 = vadd.f32 %v2558, %v2559
      %v2561 = vsel %vm1922, %v2507, 0.0
      %v2562 = vadd.f32 %v2560, %v2561
      %v2563 = vsel %vm1922, %v2508, 0.0
      %v2564 = vadd.f32 %v2562, %v2563
      %v2565 = vsel %vm1922, %v2509, 0.0
      %v2566 = vadd.f32 %v2564, %v2565
      %v2567 = vsel %vm1922, %v2510, 0.0
      %v2568 = vadd.f32 %v2566, %v2567
      %v2569 = vsel %vm1922, %v2511, 0.0
      %v2570 = vadd.f32 %v2568, %v2569
      %v2571 = vsel %vm1922, %v2512, 0.0
      %v2572 = vadd.f32 %v2570, %v2571
      %v2573 = vsel %vm1922, %v2513, 0.0
      %v2574 = vadd.f32 %v2572, %v2573
      %v2575 = vsel %vm1922, %v2514, 0.0
      %v2576 = vadd.f32 %v2574, %v2575
      %v2577 = vsel %vm1922, %v2515, 0.0
      %v2578 = vadd.f32 %v2576, %v2577
      %v2579 = vrot.slane %v2578, 4
      %v2580 = vadd.f32 %v2578, %v2579
      %v2581 = vrot.slane %v2580, 2
      %v2582 = vadd.f32 %v2580, %v2581
      %v2583 = vrot.slane %v2582, 1
      %v2584 = vadd.f32 %v2582, %v2583
      %v2585 = vmul.f32 %v2584, 0.00390625
      %v2586 = vpack.c.bf16 %v2585, %v2585
      %v2587 = vld [vmem:[%s3] sm:$0x3]
      %v2588 = vld [vmem:[%s6 + $0x2] sm:$0x1]
      %v2590 = vsel %vm1922, %v2586, 0
      %vm2592 = vcmask 1041408
      %v2594 = vsel %vm2592, %v2587, 0
      %2596 = vmatpush.bf16.msra.mxu0 0
      %2597 = vmatpush.bf16.msra.mxu0 0
      %2598 = vmatpush.bf16.msra.mxu0 0
      %2599 = vmatpush.bf16.msra.mxu0 0
      %2600 = vmatpush.bf16.msra.mxu0 0
      %2601 = vmatpush.bf16.msra.mxu0 0
      %2602 = vmatpush.bf16.msra.mxu0 0
      %2603 = vmatpush.bf16.msra.mxu0 %v2594
      %2604 = vmatmul.bf16.gmra.mxu0 %v2590
      %v2605 = vpop.f32.mrf.mxu0
      %v2606 = vadd.f32 %v2588, %v2605
      %v2607 = vpop.f32.mrf.mxu0
      %2608 = vdwg.mxu0
      %v2609 = vmax.f32 %v2606, 0.0
      %v2610 = vpack.c.bf16 %v2609, %v2609
      %v2611 = vld [vmem:[%s4] sm:$0xf]
      %v2612 = vld [vmem:[%s4 + $0x4] sm:$0xf]
      %v2613 = vld [vmem:[%s4 + $0x8] sm:$0xf]
      %v2614 = vld [vmem:[%s4 + $0xc] sm:$0xf]
      %v2615 = vld [vmem:[%s6 + $0x3] sm:$0x1]
      %v2620 = vunpack.c.l.b16 %v2611
      %v2621 = vunpack.c.l.b16 %v2612
      %v2622 = vunpack.c.l.b16 %v2613
      %v2623 = vunpack.c.l.b16 %v2614
      %v2624 = vpack.c.b16 %v2621, %v2620
      %v2625 = vpack.c.b16 %v2623, %v2622
      %vm2628 = vcmask 261120
      %v2630 = vsel %vm2628, %v2610, 0
      %2632 = vmatpush.bf16.msra.mxu0 0
      %2633 = vmatpush.bf16.msra.mxu0 0
      %2634 = vmatpush.bf16.msra.mxu0 0
      %2635 = vmatpush.bf16.msra.mxu0 0
      %2636 = vmatpush.bf16.msra.mxu0 0
      %2637 = vmatpush.bf16.msra.mxu0 0
      %2638 = vmatpush.bf16.msra.mxu0 %v2625
      %2639 = vmatpush.bf16.msra.mxu0 %v2624
      %2640 = vmatmul.bf16.gmra.mxu0 %v2630
      %v2641 = vpop.f32.mrf.mxu0
      %v2642 = vadd.f32 %v2615, %v2641
      %v2643 = vpop.f32.mrf.mxu0
      %2644 = vdwg.mxu0
      %v2645 = vxor.u32 %v2642, 2147483648
      %v2646 = vmul.f32 %v2645, 1.442695
      %v2647 = vpow.pop %v2646
      %v2648 = vadd.f32 %v2647, 1.0
      %v2649 = vrcp.pop %v2648
      %v2650 = vmul.f32 %v2648, %v2649
      %v2651 = vsub.f32 1.0, %v2650
      %v2652 = vmul.f32 %v2649, %v2651
      %v2653 = vadd.f32 %v2649, %v2652
      %vm2654 = vweird.f32 %v2648
      %vm2655 = vweird.f32 %v2649
      %vm2656 = vmor %vm2654, %vm2655
      %v2657 = vsel %vm2656, %v2649, %v2653
      %v2658 = vand.u32 2147483647, %v2648
      %vm2659 = vcmp.eq.f32.partialorder %v2658, 8.507059e+37
      %v2660 = vand.u32 %v2648, 2147483648
      %v2661 = vor.u32 1.1754944e-38, %v2660
      %v2662 = vsel %vm2659, %v2661, %v2657
      %v2663 = vmul.f32 1.0, %v2662
      %v2664 = vperm.slane %v2663, 0
      %v2665 = vmul.f32 %v2484, %v2664
      %v2666 = vmul.f32 %v2485, %v2664
      %v2667 = vmul.f32 %v2486, %v2664
      %v2668 = vmul.f32 %v2487, %v2664
      %v2669 = vmul.f32 %v2488, %v2664
      %v2670 = vmul.f32 %v2489, %v2664
      %v2671 = vmul.f32 %v2490, %v2664
      %v2672 = vmul.f32 %v2491, %v2664
      %v2673 = vmul.f32 %v2492, %v2664
      %v2674 = vmul.f32 %v2493, %v2664
      %v2675 = vmul.f32 %v2494, %v2664
      %v2676 = vmul.f32 %v2495, %v2664
      %v2677 = vmul.f32 %v2496, %v2664
      %v2678 = vmul.f32 %v2497, %v2664
      %v2679 = vmul.f32 %v2498, %v2664
      %v2680 = vmul.f32 %v2499, %v2664
      %v2681 = vmul.f32 %v2500, %v2664
      %v2682 = vmul.f32 %v2501, %v2664
      %v2683 = vmul.f32 %v2502, %v2664
      %v2684 = vmul.f32 %v2503, %v2664
      %v2685 = vmul.f32 %v2504, %v2664
      %v2686 = vmul.f32 %v2505, %v2664
      %v2687 = vmul.f32 %v2506, %v2664
      %v2688 = vmul.f32 %v2507, %v2664
      %v2689 = vmul.f32 %v2508, %v2664
      %v2690 = vmul.f32 %v2509, %v2664
      %v2691 = vmul.f32 %v2510, %v2664
      %v2692 = vmul.f32 %v2511, %v2664
      %v2693 = vmul.f32 %v2512, %v2664
      %v2694 = vmul.f32 %v2513, %v2664
      %v2695 = vmul.f32 %v2514, %v2664
      %v2696 = vmul.f32 %v2515, %v2664
      %v2697 = vpack.c.bf16 %v2666, %v2665
      %v2698 = vpack.c.bf16 %v2668, %v2667
      %v2699 = vpack.c.bf16 %v2670, %v2669
      %v2700 = vpack.c.bf16 %v2672, %v2671
      %v2701 = vpack.c.bf16 %v2674, %v2673
      %v2702 = vpack.c.bf16 %v2676, %v2675
      %v2703 = vpack.c.bf16 %v2678, %v2677
      %v2704 = vpack.c.bf16 %v2680, %v2679
      %v2705 = vpack.c.bf16 %v2682, %v2681
      %v2706 = vpack.c.bf16 %v2684, %v2683
      %v2707 = vpack.c.bf16 %v2686, %v2685
      %v2708 = vpack.c.bf16 %v2688, %v2687
      %v2709 = vpack.c.bf16 %v2690, %v2689
      %v2710 = vpack.c.bf16 %v2692, %v2691
      %v2711 = vpack.c.bf16 %v2694, %v2693
      %v2712 = vpack.c.bf16 %v2696, %v2695
      %v2713 = vld [vmem:[%s5] sm:$0x3]
      %v2714 = vld [vmem:[%s6 + $0x4] sm:$0x1]
      %v2715 = vperm.slane %v2714, 0
      %v2717 = vsel %vm1922, %v2697, 0
      %v2720 = vsel %vm1922, %v2698, 0
      %v2723 = vsel %vm1922, %v2699, 0
      %v2726 = vsel %vm1922, %v2700, 0
      %v2729 = vsel %vm1922, %v2701, 0
      %v2732 = vsel %vm1922, %v2702, 0
      %v2735 = vsel %vm1922, %v2703, 0
      %v2738 = vsel %vm1922, %v2704, 0
      %v2741 = vsel %vm1922, %v2705, 0
      %v2744 = vsel %vm1922, %v2706, 0
      %v2747 = vsel %vm1922, %v2707, 0
      %v2750 = vsel %vm1922, %v2708, 0
      %v2753 = vsel %vm1922, %v2709, 0
      %v2756 = vsel %vm1922, %v2710, 0
      %v2759 = vsel %vm1922, %v2711, 0
      %v2762 = vsel %vm1922, %v2712, 0
      %v2765 = vsel %vm2592, %v2713, 0
      %2767 = vmatpush.bf16.msra.mxu0 0
      %2768 = vmatpush.bf16.msra.mxu0 0
      %2769 = vmatpush.bf16.msra.mxu0 0
      %2770 = vmatpush.bf16.msra.mxu0 0
      %2771 = vmatpush.bf16.msra.mxu0 0
      %2772 = vmatpush.bf16.msra.mxu0 0
      %2773 = vmatpush.bf16.msra.mxu0 0
      %2774 = vmatpush.bf16.msra.mxu0 %v2765
      %2775 = vmatmul.bf16.gmra.mxu0 %v2717
      %v2776 = vpop.f32.mrf.mxu0
      %v2777 = vadd.f32 %v2715, %v2776
      %v2778 = vpop.f32.mrf.mxu0
      %v2779 = vadd.f32 %v2715, %v2778
      %2780 = vmatmul.bf16.gmra.mxu0 %v2720
      %v2781 = vpop.f32.mrf.mxu0
      %v2782 = vadd.f32 %v2715, %v2781
      %v2783 = vpop.f32.mrf.mxu0
      %v2784 = vadd.f32 %v2715, %v2783
      %2785 = vmatmul.bf16.gmra.mxu0 %v2723
      %v2786 = vpop.f32.mrf.mxu0
      %v2787 = vadd.f32 %v2715, %v2786
      %v2788 = vpop.f32.mrf.mxu0
      %v2789 = vadd.f32 %v2715, %v2788
      %2790 = vmatmul.bf16.gmra.mxu0 %v2726
      %v2791 = vpop.f32.mrf.mxu0
      %v2792 = vadd.f32 %v2715, %v2791
      %v2793 = vpop.f32.mrf.mxu0
      %v2794 = vadd.f32 %v2715, %v2793
      %2795 = vmatmul.bf16.gmra.mxu0 %v2729
      %v2796 = vpop.f32.mrf.mxu0
      %v2797 = vadd.f32 %v2715, %v2796
      %v2798 = vpop.f32.mrf.mxu0
      %v2799 = vadd.f32 %v2715, %v2798
      %2800 = vmatmul.bf16.gmra.mxu0 %v2732
      %v2801 = vpop.f32.mrf.mxu0
      %v2802 = vadd.f32 %v2715, %v2801
      %v2803 = vpop.f32.mrf.mxu0
      %v2804 = vadd.f32 %v2715, %v2803
      %2805 = vmatmul.bf16.gmra.mxu0 %v2735
      %v2806 = vpop.f32.mrf.mxu0
      %v2807 = vadd.f32 %v2715, %v2806
      %v2808 = vpop.f32.mrf.mxu0
      %v2809 = vadd.f32 %v2715, %v2808
      %2810 = vmatmul.bf16.gmra.mxu0 %v2738
      %v2811 = vpop.f32.mrf.mxu0
      %v2812 = vadd.f32 %v2715, %v2811
      %v2813 = vpop.f32.mrf.mxu0
      %v2814 = vadd.f32 %v2715, %v2813
      %2815 = vmatmul.bf16.gmra.mxu0 %v2741
      %v2816 = vpop.f32.mrf.mxu0
      %v2817 = vadd.f32 %v2715, %v2816
      %v2818 = vpop.f32.mrf.mxu0
      %v2819 = vadd.f32 %v2715, %v2818
      %2820 = vmatmul.bf16.gmra.mxu0 %v2744
      %v2821 = vpop.f32.mrf.mxu0
      %v2822 = vadd.f32 %v2715, %v2821
      %v2823 = vpop.f32.mrf.mxu0
      %v2824 = vadd.f32 %v2715, %v2823
      %2825 = vmatmul.bf16.gmra.mxu0 %v2747
      %v2826 = vpop.f32.mrf.mxu0
      %v2827 = vadd.f32 %v2715, %v2826
      %v2828 = vpop.f32.mrf.mxu0
      %v2829 = vadd.f32 %v2715, %v2828
      %2830 = vmatmul.bf16.gmra.mxu0 %v2750
      %v2831 = vpop.f32.mrf.mxu0
      %v2832 = vadd.f32 %v2715, %v2831
      %v2833 = vpop.f32.mrf.mxu0
      %v2834 = vadd.f32 %v2715, %v2833
      %2835 = vmatmul.bf16.gmra.mxu0 %v2753
      %v2836 = vpop.f32.mrf.mxu0
      %v2837 = vadd.f32 %v2715, %v2836
      %v2838 = vpop.f32.mrf.mxu0
      %v2839 = vadd.f32 %v2715, %v2838
      %2840 = vmatmul.bf16.gmra.mxu0 %v2756
      %v2841 = vpop.f32.mrf.mxu0
      %v2842 = vadd.f32 %v2715, %v2841
      %v2843 = vpop.f32.mrf.mxu0
      %v2844 = vadd.f32 %v2715, %v2843
      %2845 = vmatmul.bf16.gmra.mxu0 %v2759
      %v2846 = vpop.f32.mrf.mxu0
      %v2847 = vadd.f32 %v2715, %v2846
      %v2848 = vpop.f32.mrf.mxu0
      %v2849 = vadd.f32 %v2715, %v2848
      %2850 = vmatmul.bf16.gmra.mxu0 %v2762
      %v2851 = vpop.f32.mrf.mxu0
      %v2852 = vadd.f32 %v2715, %v2851
      %v2853 = vpop.f32.mrf.mxu0
      %v2854 = vadd.f32 %v2715, %v2853
      %2855 = vdwg.mxu0
      %v2856 = vunpack.c.l.bf16 %v280
      %v2857 = vunpack.c.l.bf16 %v281
      %v2858 = vunpack.c.l.bf16 %v282
      %v2859 = vunpack.c.l.bf16 %v283
      %v2860 = vunpack.c.l.bf16 %v284
      %v2861 = vunpack.c.l.bf16 %v285
      %v2862 = vunpack.c.l.bf16 %v286
      %v2863 = vunpack.c.l.bf16 %v287
      %v2864 = vunpack.c.l.bf16 %v288
      %v2865 = vunpack.c.l.bf16 %v289
      %v2866 = vunpack.c.l.bf16 %v290
      %v2867 = vunpack.c.l.bf16 %v291
      %v2868 = vunpack.c.l.bf16 %v292
      %v2869 = vunpack.c.l.bf16 %v293
      %v2870 = vunpack.c.l.bf16 %v294
      %v2871 = vunpack.c.l.bf16 %v295
      %v2872 = vunpack.c.l.bf16 %v296
      %v2873 = vunpack.c.l.bf16 %v297
      %v2874 = vunpack.c.l.bf16 %v298
      %v2875 = vunpack.c.l.bf16 %v299
      %v2876 = vunpack.c.l.bf16 %v300
      %v2877 = vunpack.c.l.bf16 %v301
      %v2878 = vunpack.c.l.bf16 %v302
      %v2879 = vunpack.c.l.bf16 %v303
      %v2880 = vunpack.c.l.bf16 %v304
      %v2881 = vunpack.c.l.bf16 %v305
      %v2882 = vunpack.c.l.bf16 %v306
      %v2883 = vunpack.c.l.bf16 %v307
      %v2884 = vunpack.c.l.bf16 %v308
      %v2885 = vunpack.c.l.bf16 %v309
      %v2886 = vunpack.c.l.bf16 %v310
      %v2887 = vunpack.c.l.bf16 %v311
      %v2888 = vadd.f32 %v2777, %v2856
      %v2889 = vadd.f32 %v2779, %v2857
      %v2890 = vadd.f32 %v2782, %v2858
      %v2891 = vadd.f32 %v2784, %v2859
      %v2892 = vadd.f32 %v2787, %v2860
      %v2893 = vadd.f32 %v2789, %v2861
      %v2894 = vadd.f32 %v2792, %v2862
      %v2895 = vadd.f32 %v2794, %v2863
      %v2896 = vadd.f32 %v2797, %v2864
      %v2897 = vadd.f32 %v2799, %v2865
      %v2898 = vadd.f32 %v2802, %v2866
      %v2899 = vadd.f32 %v2804, %v2867
      %v2900 = vadd.f32 %v2807, %v2868
      %v2901 = vadd.f32 %v2809, %v2869
      %v2902 = vadd.f32 %v2812, %v2870
      %v2903 = vadd.f32 %v2814, %v2871
      %v2904 = vadd.f32 %v2817, %v2872
      %v2905 = vadd.f32 %v2819, %v2873
      %v2906 = vadd.f32 %v2822, %v2874
      %v2907 = vadd.f32 %v2824, %v2875
      %v2908 = vadd.f32 %v2827, %v2876
      %v2909 = vadd.f32 %v2829, %v2877
      %v2910 = vadd.f32 %v2832, %v2878
      %v2911 = vadd.f32 %v2834, %v2879
      %v2912 = vadd.f32 %v2837, %v2880
      %v2913 = vadd.f32 %v2839, %v2881
      %v2914 = vadd.f32 %v2842, %v2882
      %v2915 = vadd.f32 %v2844, %v2883
      %v2916 = vadd.f32 %v2847, %v2884
      %v2917 = vadd.f32 %v2849, %v2885
      %v2918 = vadd.f32 %v2852, %v2886
      %v2919 = vadd.f32 %v2854, %v2887
      %v2920 = vmax.f32 %v2888, 0.0
      %v2921 = vmax.f32 %v2889, 0.0
      %v2922 = vmax.f32 %v2890, 0.0
      %v2923 = vmax.f32 %v2891, 0.0
      %v2924 = vmax.f32 %v2892, 0.0
      %v2925 = vmax.f32 %v2893, 0.0
      %v2926 = vmax.f32 %v2894, 0.0
      %v2927 = vmax.f32 %v2895, 0.0
      %v2928 = vmax.f32 %v2896, 0.0
      %v2929 = vmax.f32 %v2897, 0.0
      %v2930 = vmax.f32 %v2898, 0.0
      %v2931 = vmax.f32 %v2899, 0.0
      %v2932 = vmax.f32 %v2900, 0.0
      %v2933 = vmax.f32 %v2901, 0.0
      %v2934 = vmax.f32 %v2902, 0.0
      %v2935 = vmax.f32 %v2903, 0.0
      %v2936 = vmax.f32 %v2904, 0.0
      %v2937 = vmax.f32 %v2905, 0.0
      %v2938 = vmax.f32 %v2906, 0.0
      %v2939 = vmax.f32 %v2907, 0.0
      %v2940 = vmax.f32 %v2908, 0.0
      %v2941 = vmax.f32 %v2909, 0.0
      %v2942 = vmax.f32 %v2910, 0.0
      %v2943 = vmax.f32 %v2911, 0.0
      %v2944 = vmax.f32 %v2912, 0.0
      %v2945 = vmax.f32 %v2913, 0.0
      %v2946 = vmax.f32 %v2914, 0.0
      %v2947 = vmax.f32 %v2915, 0.0
      %v2948 = vmax.f32 %v2916, 0.0
      %v2949 = vmax.f32 %v2917, 0.0
      %v2950 = vmax.f32 %v2918, 0.0
      %v2951 = vmax.f32 %v2919, 0.0
      %2952 = vst.msk [vmem:[%s278] sm:$0xff] %vm402, %v2920
      %2953 = vst.msk [vmem:[%s278 + $0x8] sm:$0xff] %vm402, %v2921
      %2954 = vst.msk [vmem:[%s278 + $0x10] sm:$0xff] %vm402, %v2922
      %2955 = vst.msk [vmem:[%s278 + $0x18] sm:$0xff] %vm402, %v2923
      %2956 = vst.msk [vmem:[%s278 + $0x20] sm:$0xff] %vm402, %v2924
      %2957 = vst.msk [vmem:[%s278 + $0x28] sm:$0xff] %vm402, %v2925
      %2958 = vst.msk [vmem:[%s278 + $0x30] sm:$0xff] %vm402, %v2926
      %2959 = vst.msk [vmem:[%s278 + $0x38] sm:$0xff] %vm402, %v2927
      %2960 = vst.msk [vmem:[%s278 + $0x40] sm:$0xff] %vm402, %v2928
      %2961 = vst.msk [vmem:[%s278 + $0x48] sm:$0xff] %vm402, %v2929
      %2962 = vst.msk [vmem:[%s278 + $0x50] sm:$0xff] %vm402, %v2930
      %2963 = vst.msk [vmem:[%s278 + $0x58] sm:$0xff] %vm402, %v2931
      %2964 = vst.msk [vmem:[%s278 + $0x60] sm:$0xff] %vm402, %v2932
      %2965 = vst.msk [vmem:[%s278 + $0x68] sm:$0xff] %vm402, %v2933
      %2966 = vst.msk [vmem:[%s278 + $0x70] sm:$0xff] %vm402, %v2934
      %2967 = vst.msk [vmem:[%s278 + $0x78] sm:$0xff] %vm402, %v2935
      %2968 = vst.msk [vmem:[%s278 + $0x80] sm:$0xff] %vm402, %v2936
      %2969 = vst.msk [vmem:[%s278 + $0x88] sm:$0xff] %vm402, %v2937
      %2970 = vst.msk [vmem:[%s278 + $0x90] sm:$0xff] %vm402, %v2938
      %2971 = vst.msk [vmem:[%s278 + $0x98] sm:$0xff] %vm402, %v2939
      %2972 = vst.msk [vmem:[%s278 + $0xa0] sm:$0xff] %vm402, %v2940
      %2973 = vst.msk [vmem:[%s278 + $0xa8] sm:$0xff] %vm402, %v2941
      %2974 = vst.msk [vmem:[%s278 + $0xb0] sm:$0xff] %vm402, %v2942
      %2975 = vst.msk [vmem:[%s278 + $0xb8] sm:$0xff] %vm402, %v2943
      %2976 = vst.msk [vmem:[%s278 + $0xc0] sm:$0xff] %vm402, %v2944
      %2977 = vst.msk [vmem:[%s278 + $0xc8] sm:$0xff] %vm402, %v2945
      %2978 = vst.msk [vmem:[%s278 + $0xd0] sm:$0xff] %vm402, %v2946
      %2979 = vst.msk [vmem:[%s278 + $0xd8] sm:$0xff] %vm402, %v2947
      %2980 = vst.msk [vmem:[%s278 + $0xe0] sm:$0xff] %vm402, %v2948
      %2981 = vst.msk [vmem:[%s278 + $0xe8] sm:$0xff] %vm402, %v2949
      %2982 = vst.msk [vmem:[%s278 + $0xf0] sm:$0xff] %vm402, %v2950
      %2983 = vst.msk [vmem:[%s278 + $0xf8] sm:$0xff] %vm402, %v2951
      %p2984 = scmp.lt.s32.totalorder %s18, 1
      %s2985 = scalar_select %p2984, %s18, 1
      %s2986 = smul.addr %s2985, 32
      %s2987 = smul.addr %s2986, 8
      %s2988 = scalar_lea.vmem %s7, %s2987
      // Predicated region
      $region49: #{tpu_custom_call.1} parent=47 // pred_check
        %p2989 = pneg %p188
      $region50: #{tpu_custom_call.1} parent=47 // pred_check_branch
        %2991 = sbr.rel (%p2989) target = $region52
      $region51: #{tpu_custom_call.1} parent=47 // pred_region
        _
      $region52: #{tpu_custom_call.1} parent=47 // pred_fallthru
        _
    $region48: #{tpu_custom_call.1} parent=5 // pred_fallthru
      _
    %p2992 = scmp.le.s32.totalorder 2, %s13
    // Predicated region
    $region53: #{tpu_custom_call.1} parent=5 // pred_check
      %p2993 = pneg %p2992
    $region54: #{tpu_custom_call.1} parent=5 // pred_check_branch
      %2995 = sbr.rel (%p2993) target = $region56
    $region55: #{tpu_custom_call.1} parent=5 // pred_region
      %s2996 = ssub.s32 %s13, 2
      // Predicated region
      $region57: #{tpu_custom_call.1} parent=55 // pred_check
        %p2997 = pneg %p194
      $region58: #{tpu_custom_call.1} parent=55 // pred_check_branch
        %2999 = sbr.rel (%p2997) target = $region60
      $region59: #{tpu_custom_call.1} parent=55 // pred_region
        %p3000 = scmp.lt.s32.totalorder %s19, 1
        %s3001 = scalar_select %p3000, %s19, 1
        %s3002 = smul.addr %s3001, 32
        %s3003 = smul.addr %s3002, 8
        %s3004 = scalar_lea.vmem %s7, %s3003
      $region60: #{tpu_custom_call.1} parent=55 // pred_fallthru
        _
    $region56: #{tpu_custom_call.1} parent=5 // pred_fallthru
      _
  $region6: #{tpu_custom_call.1} parent=0 // loop_footer
    %s17 = sadd.s32 1, %s13
  $region7: #{tpu_custom_call.1} parent=0 // loop_footer_branch
    %12 = sbr.rel target = $region3
  $region8: #{tpu_custom_call.1} parent=0 // loop_exit
    _

</llo_original>
